<compile_context>
chip_gen: v7x
topology: tpu7x:2x2x1
jax: 0.10.0
libtpu: 0.0.40
codegen_flags: <defaults>
</compile_context>

<pallas_src>
import jax
import jax.numpy as jnp
import numpy as np
from jax.experimental import pallas as pl
from jax.experimental.pallas import tpu as pltpu


def _proj_kernel(x_ref, w_ref, b_ref, a_ref, o_ref):
    # x_ref: [1, K, TS] f32    w_ref: [N, K] (bf16 or f32)
    # b_ref: [N, 1] f32        a_ref: [N, 1] f32
    # o_ref: [1, N, TS] f32
    x = x_ref[0].astype(w_ref.dtype)                                 # in-kernel cast (VPU)
    y = jnp.dot(w_ref[...], x, preferred_element_type=jnp.float32)   # MXU -> [N, TS] f32
    y = y + b_ref[...]                                               # bias broadcast over lanes
    a = a_ref[...]                                                   # per-channel PReLU slope
    o_ref[0] = jnp.where(y >= 0.0, y, a * y)


def projection_unit_forward(x, w_orig, bias, alpha, *, tile_s=1024, use_bf16=True):
    """x: [B, C1, C2, H, W] float32. Returns [B, out_channel, H, W] float32 (NCHW)."""
    B, C1, C2, H, W = x.shape
    Cin = C1 * C2
    Cout = w_orig.shape[0]
    assert w_orig.shape == (Cout, Cin, 1, 1)
    HW = H * W

    # EqualLR scaling: fan_in = weight.size(1) * weight[0][0].numel() = Cin * 1
    scale = jnp.sqrt(2.0 / Cin).astype(jnp.float32)
    mm_dtype = jnp.bfloat16 if use_bf16 else jnp.float32
    w_mat = (w_orig[:, :, 0, 0] * scale).astype(mm_dtype)   # [Cout, Cin] (tiny)

    # NCHW kept as-is: only a free-view reshape of the spatial dims; stays f32.
    x3 = x.reshape(B, Cin, HW)                               # [B, Cin, HW]

    b2 = bias.reshape(Cout, 1).astype(jnp.float32)
    a2 = alpha.reshape(Cout, 1).astype(jnp.float32)

    # Spatial tiling: wide lane-dense tiles; full extent if the image is small.
    TS = HW if HW <= tile_s else tile_s
    grid_s = pl.cdiv(HW, TS)

    in_bytes = x3.size * x3.dtype.itemsize + w_mat.size * w_mat.dtype.itemsize
    out_bytes = B * Cout * HW * 4
    cost = pl.CostEstimate(
        flops=2 * B * HW * Cout * Cin,
        transcendentals=0,
        bytes_accessed=in_bytes + out_bytes + 2 * Cout * 4,
    )

    y = pl.pallas_call(
        _proj_kernel,
        out_shape=jax.ShapeDtypeStruct((B, Cout, HW), jnp.float32),
        grid_spec=pl.GridSpec(
            grid=(B, grid_s),
            in_specs=[
                pl.BlockSpec((1, Cin, TS), lambda b, s: (b, 0, s)),   # X tile (f32)
                pl.BlockSpec((Cout, Cin), lambda b, s: (0, 0)),       # W (resident)
                pl.BlockSpec((Cout, 1), lambda b, s: (0, 0)),         # bias (resident)
                pl.BlockSpec((Cout, 1), lambda b, s: (0, 0)),         # alpha (resident)
            ],
            out_specs=pl.BlockSpec((1, Cout, TS), lambda b, s: (b, 0, s)),
        ),
        compiler_params=pltpu.CompilerParams(
            dimension_semantics=("parallel", "parallel"),
            vmem_limit_bytes=32 * 1024 * 1024,
        ),
        cost_estimate=cost,
    )(x3, w_mat, b2, a2)

    # Free view back to NCHW spatial dims — no transpose pass.
    return y.reshape(B, Cout, H, W)


def _reference(x, w_orig, bias, alpha, *, use_bf16=True):
    """NumPy reference. Mirrors the bf16 operand rounding the kernel performs."""
    B, C1, C2, H, W = x.shape
    Cin = C1 * C2
    scale = np.sqrt(2.0 / Cin).astype(np.float32)
    w = np.asarray(w_orig)[:, :, 0, 0] * scale                 # [Cout, Cin]
    xr = np.asarray(x).reshape(B, Cin, H, W)
    if use_bf16:
        w = np.asarray(jnp.asarray(w).astype(jnp.bfloat16).astype(jnp.float32))
        xr = np.asarray(jnp.asarray(xr).astype(jnp.bfloat16).astype(jnp.float32))
    y = np.einsum('bchw,oc->bohw', xr, w) + np.asarray(bias)[None, :, None, None]
    a = np.asarray(alpha)[None, :, None, None]
    return np.where(y >= 0, y, a * y)


if __name__ == "__main__":
    key = jax.random.PRNGKey(0)
    k1, k2 = jax.random.split(key)

    # small shapes: in_channel = C1*C2 = 32; out_channel must be 1024 to match PReLU(1024)
    B, C1, C2, H, W = 2, 4, 8, 8, 8
    Cin, Cout = C1 * C2, 1024

    x = jax.random.normal(k1, (B, C1, C2, H, W), dtype=jnp.float32)

    # Deterministic param init mirroring EqualConv2d / PReLU(1024) defaults.
    w_orig = jax.random.normal(k2, (Cout, Cin, 1, 1), dtype=jnp.float32)  # conv.weight.data.normal_()
    bias = jnp.zeros((Cout,), dtype=jnp.float32)                          # conv.bias.data.zero_()
    alpha = jnp.full((Cout,), 0.25, dtype=jnp.float32)                    # nn.PReLU default init

    out = projection_unit_forward(x, w_orig, bias, alpha)
    out = jax.block_until_ready(out)

    ref = _reference(x, w_orig, bias, alpha)
    assert out.shape == (B, Cout, H, W)
    np.testing.assert_allclose(np.asarray(out), ref, rtol=1e-3, atol=1e-3)

    print("KERNEL_OK")
</pallas_src>

<mosaic_0001>
module attributes {stable_mosaic.version = 11 : i64} {
  func.func @_proj_kernel(%arg0: i32, %arg1: i32, %arg2: memref<1x32x64xf32, #tpu.memory_space<vmem>>, %arg3: memref<1024x32xbf16, #tpu.memory_space<vmem>>, %arg4: memref<1024x1xf32, #tpu.memory_space<vmem>>, %arg5: memref<1024x1xf32, #tpu.memory_space<vmem>>, %arg6: memref<1x1024x64xf32, #tpu.memory_space<vmem>>) attributes {dimension_semantics = [#tpu.dimension_semantics<parallel>, #tpu.dimension_semantics<parallel>], iteration_bounds = array<i64: 2, 1>, scalar_prefetch = 0 : i64, scratch_operands = 0 : i64, tpu.core_type = #tpu.core_type<tc>, window_params = [{transform_indices = @transform_0, window_bounds = array<i64: 1, 32, 64>}, {pipeline_mode = #tpu.pipeline_mode<synchronous>, transform_indices = @transform_1, window_bounds = array<i64: 1024, 32>}, {pipeline_mode = #tpu.pipeline_mode<synchronous>, transform_indices = @transform_2, window_bounds = array<i64: 1024, 1>}, {pipeline_mode = #tpu.pipeline_mode<synchronous>, transform_indices = @transform_3, window_bounds = array<i64: 1024, 1>}, {transform_indices = @transform_4, window_bounds = array<i64: 1, 1024, 64>}]} {
    %c0 = arith.constant 0 : index
    %c0_0 = arith.constant 0 : index
    %c0_1 = arith.constant 0 : index
    %0 = vector.load %arg2[%c0, %c0_0, %c0_1] : memref<1x32x64xf32, #tpu.memory_space<vmem>>, vector<1x32x64xf32>
    %1 = vector.shape_cast %0 : vector<1x32x64xf32> to vector<32x64xf32>
    %2 = arith.truncf %1 : vector<32x64xf32> to vector<32x64xbf16>
    %c0_2 = arith.constant 0 : index
    %c0_3 = arith.constant 0 : index
    %3 = vector.load %arg3[%c0_2, %c0_3] : memref<1024x32xbf16, #tpu.memory_space<vmem>>, vector<1024x32xbf16>
    %cst = arith.constant dense<0.000000e+00> : vector<1024x64xf32>
    %4 = tpu.matmul %3, %2, %cst {dimension_numbers = #tpu.dot_dimension_numbers<[1], [0], [0], [1], [0, 0, 1, 1], [], []>} : vector<1024x32xbf16>, vector<32x64xbf16>, vector<1024x64xf32> -> vector<1024x64xf32>
    %c0_4 = arith.constant 0 : index
    %c0_5 = arith.constant 0 : index
    %5 = vector.load %arg4[%c0_4, %c0_5] : memref<1024x1xf32, #tpu.memory_space<vmem>>, vector<1024x1xf32>
    %6 = vector.broadcast %5 : vector<1024x1xf32> to vector<1024x64xf32>
    %7 = arith.addf %4, %6 : vector<1024x64xf32>
    %c0_6 = arith.constant 0 : index
    %c0_7 = arith.constant 0 : index
    %8 = vector.load %arg5[%c0_6, %c0_7] : memref<1024x1xf32, #tpu.memory_space<vmem>>, vector<1024x1xf32>
    %cst_8 = arith.constant 0.000000e+00 : f32
    %9 = vector.broadcast %cst_8 : f32 to vector<1024x64xf32>
    %10 = arith.cmpf oge, %7, %9 : vector<1024x64xf32>
    %11 = vector.broadcast %8 : vector<1024x1xf32> to vector<1024x64xf32>
    %12 = arith.mulf %11, %7 : vector<1024x64xf32>
    %13 = arith.select %10, %7, %12 : vector<1024x64xi1>, vector<1024x64xf32>
    %c0_9 = arith.constant 0 : index
    %c0_10 = arith.constant 0 : index
    %c0_11 = arith.constant 0 : index
    %14 = vector.load %arg6[%c0_9, %c0_10, %c0_11] : memref<1x1024x64xf32, #tpu.memory_space<vmem>>, vector<1x1024x64xf32>
    %15 = vector.shape_cast %14 : vector<1x1024x64xf32> to vector<1024x64xf32>
    %16 = vector.shape_cast %13 : vector<1024x64xf32> to vector<1x1024x64xf32>
    tpu.vector_store %arg6[%c0_9, %c0_10, %c0_11], %16 {strides = array<i32>} : memref<1x1024x64xf32, #tpu.memory_space<vmem>>, vector<1x1024x64xf32>,
    return
  }
  func.func @transform_0(%arg0: i32, %arg1: i32) -> (i32, i32, i32) {
    %c0_i32 = arith.constant 0 : i32
    %c0_i32_0 = arith.constant 0 : i32
    return %arg0, %c0_i32, %arg1 : i32, i32, i32
  }
  func.func @transform_1(%arg0: i32, %arg1: i32) -> (i32, i32) {
    %c0_i32 = arith.constant 0 : i32
    %c0_i32_0 = arith.constant 0 : i32
    %c0_i32_1 = arith.constant 0 : i32
    return %c0_i32, %c0_i32_0 : i32, i32
  }
  func.func @transform_2(%arg0: i32, %arg1: i32) -> (i32, i32) {
    %c0_i32 = arith.constant 0 : i32
    %c0_i32_0 = arith.constant 0 : i32
    %c0_i32_1 = arith.constant 0 : i32
    return %c0_i32, %c0_i32_0 : i32, i32
  }
  func.func @transform_3(%arg0: i32, %arg1: i32) -> (i32, i32) {
    %c0_i32 = arith.constant 0 : i32
    %c0_i32_0 = arith.constant 0 : i32
    %c0_i32_1 = arith.constant 0 : i32
    return %c0_i32, %c0_i32_0 : i32, i32
  }
  func.func @transform_4(%arg0: i32, %arg1: i32) -> (i32, i32, i32) {
    %c0_i32 = arith.constant 0 : i32
    %c0_i32_0 = arith.constant 0 : i32
    return %arg0, %c0_i32, %arg1 : i32, i32, i32
  }
}

</mosaic_0001>

<llo_original>
// kernel: tpu_custom_call.1
$region0: #{tpu_custom_call.1}
  #allocation0 [shape = 'u32[]', space=smem, size = 0x4, offset = 0x4, fixed_abs, tag = 'smem constant byte address 0x4 - core index']
  #allocation1 [shape = 'u32[144,128]{1,0:T(1,128)}', space=vmem, size = 0x12000, scoped, tag = 'internal scratch']
  %s0 = inlined_call_operand.vmem [shape: f32[2,32,64], index: 0, kind: input, shape index: {}]
  %s1 = inlined_call_operand.vmem [shape: bf16[1024,32], index: 1, kind: input, shape index: {}]
  %s2 = inlined_call_operand.vmem [shape: f32[1024,1], index: 2, kind: input, shape index: {}]
  %s3 = inlined_call_operand.vmem [shape: f32[1024,1], index: 3, kind: input, shape index: {}]
  %s4 = inlined_call_operand.vmem [shape: f32[2,1024,64], index: 4, kind: output, shape index: {}]
  %s5 = sld [smem:[#allocation0]]
  $region49: #{tpu_custom_call.1} parent=0
    _
  %s7 = ssub.s32 1, %s5
  %s8 = scalar_select 0, %s7, %s5
  loop: start=0, step=1, limit=4
  $region2: #{tpu_custom_call.1} parent=0 // loop_pre_header
    _
  $region3: #{tpu_custom_call.1} parent=0 // loop_header
    %s10 = sphi 0, %s14
    %p11 = scmp.ge.s32.totalorder %s10, 4
    %s17 = sphi 0, %s29
    %s18 = sphi 0, %s25
    %s19 = sphi 0, %s17
    %s20 = sphi 0, %s18
    %s21 = sphi 0, %s19
    %s22 = sphi 0, %s20
    %s34 = sphi 0, %s36
    %s37 = sphi 0, %s34
    %s38 = sphi 0, %s37
    %s54 = sphi 0, %s38
    %s58 = sphi 0, %s58
    %s60 = sphi 0, %s58
    %s61 = sphi 0, %s60
    %s75 = sphi 0, %s61
    %s79 = sphi 0, %s79
    %s81 = sphi 0, %s79
    %s82 = sphi 0, %s81
    %s96 = sphi 0, %s82
    %s100 = sphi 0, %s100
    %s102 = sphi 0, %s100
    %s103 = sphi 0, %s102
    %s117 = sphi 0, %s103
    %s125 = sphi 0, %s127
    %s128 = sphi 0, %s125
    %s129 = sphi 0, %s128
    %s145 = sphi 0, %s129
  $region4: #{tpu_custom_call.1} parent=0 // loop_header_branch
    %13 = sbr.rel (%p11) target = $region8
  $region5: #{tpu_custom_call.1} parent=0 // loop_body
    %s15 = ssub.s32 %s10, 1
    %s16 = ssub.s32 %s10, 2
    %s23 = sadd.s32 1, %s18
    %p24 = scmp.ge.s32.totalorder %s23, 1
    %s25 = scalar_select %p24, 0, %s23
    %s26 = sadd.s32 1, %s17
    %s27 = scalar_select %p24, %s26, %s17
    %p28 = scmp.ge.s32.totalorder %s27, 2
    %s29 = scalar_select %p28, 0, %s27
    %s30 = ssub.s32 %s17, %s29
    %s31 = ssub.s32 %s18, %s25
    %s32 = sor.u32 %s30, %s31
    %p33 = scmp.eq.s32.totalorder %s32, 0
    %s35 = sadd.s32 %s34, 1
    %s36 = scalar_select %p33, %s34, %s35
    %p39 = pneg %p33
    %p40 = scmp.eq.s32.totalorder %s10, 1
    %p41 = por %p39, %p40
    %p42 = scmp.ne.s32.totalorder %s34, %s37
    %p43 = scmp.eq.s32.totalorder %s10, 0
    %p44 = por %p42, %p43
    %p45 = scmp.ne.s32.totalorder %s34, %s37
    %p46 = scmp.eq.s32.totalorder %s15, 1
    %p47 = por %p45, %p46
    %p48 = scmp.ne.s32.totalorder %s37, %s38
    %p49 = scmp.eq.s32.totalorder %s15, 0
    %p50 = por %p48, %p49
    %p51 = scmp.ne.s32.totalorder %s37, %s38
    %p52 = scmp.eq.s32.totalorder %s16, 1
    %p53 = por %p51, %p52
    %p55 = scmp.ne.s32.totalorder %s38, %s54
    %p56 = scmp.eq.s32.totalorder %s16, 0
    %p57 = por %p55, %p56
    %s59 = sadd.s32 %s58, 1
    %p62 = scmp.eq.s32.totalorder %s10, 1
    %p63 = scmp.ne.s32.totalorder %s58, %s60
    %p64 = scmp.eq.s32.totalorder %s10, 0
    %p65 = por %p63, %p64
    %p66 = scmp.ne.s32.totalorder %s58, %s60
    %p67 = scmp.eq.s32.totalorder %s15, 1
    %p68 = por %p66, %p67
    %p69 = scmp.ne.s32.totalorder %s60, %s61
    %p70 = scmp.eq.s32.totalorder %s15, 0
    %p71 = por %p69, %p70
    %p72 = scmp.ne.s32.totalorder %s60, %s61
    %p73 = scmp.eq.s32.totalorder %s16, 1
    %p74 = por %p72, %p73
    %p76 = scmp.ne.s32.totalorder %s61, %s75
    %p77 = scmp.eq.s32.totalorder %s16, 0
    %p78 = por %p76, %p77
    %s80 = sadd.s32 %s79, 1
    %p83 = scmp.eq.s32.totalorder %s10, 1
    %p84 = scmp.ne.s32.totalorder %s79, %s81
    %p85 = scmp.eq.s32.totalorder %s10, 0
    %p86 = por %p84, %p85
    %p87 = scmp.ne.s32.totalorder %s79, %s81
    %p88 = scmp.eq.s32.totalorder %s15, 1
    %p89 = por %p87, %p88
    %p90 = scmp.ne.s32.totalorder %s81, %s82
    %p91 = scmp.eq.s32.totalorder %s15, 0
    %p92 = por %p90, %p91
    %p93 = scmp.ne.s32.totalorder %s81, %s82
    %p94 = scmp.eq.s32.totalorder %s16, 1
    %p95 = por %p93, %p94
    %p97 = scmp.ne.s32.totalorder %s82, %s96
    %p98 = scmp.eq.s32.totalorder %s16, 0
    %p99 = por %p97, %p98
    %s101 = sadd.s32 %s100, 1
    %p104 = scmp.eq.s32.totalorder %s10, 1
    %p105 = scmp.ne.s32.totalorder %s100, %s102
    %p106 = scmp.eq.s32.totalorder %s10, 0
    %p107 = por %p105, %p106
    %p108 = scmp.ne.s32.totalorder %s100, %s102
    %p109 = scmp.eq.s32.totalorder %s15, 1
    %p110 = por %p108, %p109
    %p111 = scmp.ne.s32.totalorder %s102, %s103
    %p112 = scmp.eq.s32.totalorder %s15, 0
    %p113 = por %p111, %p112
    %p114 = scmp.ne.s32.totalorder %s102, %s103
    %p115 = scmp.eq.s32.totalorder %s16, 1
    %p116 = por %p114, %p115
    %p118 = scmp.ne.s32.totalorder %s103, %s117
    %p119 = scmp.eq.s32.totalorder %s16, 0
    %p120 = por %p118, %p119
    %s121 = ssub.s32 %s17, %s29
    %s122 = ssub.s32 %s18, %s25
    %s123 = sor.u32 %s121, %s122
    %p124 = scmp.eq.s32.totalorder %s123, 0
    %s126 = sadd.s32 %s125, 1
    %s127 = scalar_select %p124, %s125, %s126
    %p130 = pneg %p124
    %p131 = scmp.eq.s32.totalorder %s10, 1
    %p132 = por %p130, %p131
    %p133 = scmp.ne.s32.totalorder %s125, %s128
    %p134 = scmp.eq.s32.totalorder %s10, 0
    %p135 = por %p133, %p134
    %p136 = scmp.ne.s32.totalorder %s125, %s128
    %p137 = scmp.eq.s32.totalorder %s15, 1
    %p138 = por %p136, %p137
    %p139 = scmp.ne.s32.totalorder %s128, %s129
    %p140 = scmp.eq.s32.totalorder %s15, 0
    %p141 = por %p139, %p140
    %p142 = scmp.ne.s32.totalorder %s128, %s129
    %p143 = scmp.eq.s32.totalorder %s16, 1
    %p144 = por %p142, %p143
    %p146 = scmp.ne.s32.totalorder %s129, %s145
    %p147 = scmp.eq.s32.totalorder %s16, 0
    %p148 = por %p146, %p147
    %p149 = scmp.le.s32.totalorder 1, %s10
    %p150 = scmp.lt.s32.totalorder %s10, 3
    %p151 = pnand %p149, %p150
    %p152 = pneg %p151
    // Predicated region
    $region9: #{tpu_custom_call.1} parent=5 // pred_check
      _
    $region10: #{tpu_custom_call.1} parent=5 // pred_check_branch
      %154 = sbr.rel (%p151) target = $region12
    $region11: #{tpu_custom_call.1} parent=5 // pred_region
      %s155 = ssub.s32 %s10, 1
      // Predicated region
      $region13: #{tpu_custom_call.1} parent=11 // pred_check
        %p156 = pneg %p71
      $region14: #{tpu_custom_call.1} parent=11 // pred_check_branch
        %158 = sbr.rel (%p156) target = $region16
      $region15: #{tpu_custom_call.1} parent=11 // pred_region
        _
      $region16: #{tpu_custom_call.1} parent=11 // pred_fallthru
        _
      // Predicated region
      $region17: #{tpu_custom_call.1} parent=11 // pred_check
        %p159 = pneg %p92
      $region18: #{tpu_custom_call.1} parent=11 // pred_check_branch
        %161 = sbr.rel (%p159) target = $region20
      $region19: #{tpu_custom_call.1} parent=11 // pred_region
        _
      $region20: #{tpu_custom_call.1} parent=11 // pred_fallthru
        _
      // Predicated region
      $region21: #{tpu_custom_call.1} parent=11 // pred_check
        %p162 = pneg %p113
      $region22: #{tpu_custom_call.1} parent=11 // pred_check_branch
        %164 = sbr.rel (%p162) target = $region24
      $region23: #{tpu_custom_call.1} parent=11 // pred_region
        _
      $region24: #{tpu_custom_call.1} parent=11 // pred_fallthru
        _
    $region12: #{tpu_custom_call.1} parent=5 // pred_fallthru
      _
    %p165 = scmp.lt.s32.totalorder %s10, 2
    // Predicated region
    $region25: #{tpu_custom_call.1} parent=5 // pred_check
      %p166 = pneg %p165
    $region26: #{tpu_custom_call.1} parent=5 // pred_check_branch
      %168 = sbr.rel (%p166) target = $region28
    $region27: #{tpu_custom_call.1} parent=5 // pred_region
      // Predicated region
      $region29: #{tpu_custom_call.1} parent=27 // pred_check
        %p169 = pneg %p44
      $region30: #{tpu_custom_call.1} parent=27 // pred_check_branch
        %171 = sbr.rel (%p169) target = $region32
      $region31: #{tpu_custom_call.1} parent=27 // pred_region
        %p172 = scmp.lt.s32.totalorder %s17, 1
        %s173 = scalar_select %p172, %s17, 1
        %p174 = scmp.lt.s32.totalorder %s18, 0
        %s175 = scalar_select %p174, %s18, 0
        %s176 = smul.addr %s173, 4
        %s177 = sadd.s32 %s175, %s176
        %s178 = smul.addr %s177, 8
        %s179 = scalar_lea.vmem %s0, %s178
      $region32: #{tpu_custom_call.1} parent=27 // pred_fallthru
        _
    $region28: #{tpu_custom_call.1} parent=5 // pred_fallthru
      _
    %p180 = scmp.le.s32.totalorder 1, %s10
    %p181 = scmp.lt.s32.totalorder %s10, 3
    %p182 = pnand %p180, %p181
    %p183 = pneg %p182
    // Predicated region
    $region33: #{tpu_custom_call.1} parent=5 // pred_check
      _
    $region34: #{tpu_custom_call.1} parent=5 // pred_check_branch
      %185 = sbr.rel (%p182) target = $region36
    $region35: #{tpu_custom_call.1} parent=5 // pred_region
      %s186 = ssub.s32 %s10, 1
      %p187 = scmp.lt.s32.totalorder %s19, 1
      %s188 = scalar_select %p187, %s19, 1
      %p189 = scmp.lt.s32.totalorder %s20, 0
      %s190 = scalar_select %p189, %s20, 0
      %s191 = smul.addr %s188, 4
      %s192 = sadd.s32 %s190, %s191
      %s193 = smul.addr %s192, 8
      %s194 = scalar_lea.vmem %s0, %s193
      %p195 = pneg %p50
      %p196 = pneg %p47
      %p197 = pneg %p71
      %p198 = pneg %p68
      %p199 = pneg %p92
      %p200 = pneg %p89
      %p201 = pneg %p113
      %p202 = pneg %p110
      %p203 = pneg %p141
      %p204 = pneg %p138
      %p205 = scmp.lt.s32.totalorder %s19, 1
      %s206 = scalar_select %p205, %s19, 1
      %p207 = scmp.lt.s32.totalorder %s20, 0
      %s208 = scalar_select %p207, %s20, 0
      %s209 = smul.addr %s206, 128
      %s210 = sadd.s32 %s208, %s209
      %s211 = smul.addr %s210, 8
      %s212 = scalar_lea.vmem %s4, %s211
      %p213 = scmp.lt.s32.totalorder %s19, 1
      %s214 = scalar_select %p213, %s19, 1
      %p215 = scmp.lt.s32.totalorder %s20, 0
      %s216 = scalar_select %p215, %s20, 0
      %s217 = smul.addr %s214, 4
      %s218 = sadd.s32 %s216, %s217
      %s219 = smul.addr %s218, 8
      %s220 = scalar_lea.vmem %s0, %s219
      %p221 = scmp.lt.s32.totalorder %s19, 1
      %s222 = scalar_select %p221, %s19, 1
      %p223 = scmp.lt.s32.totalorder %s20, 0
      %s224 = scalar_select %p223, %s20, 0
      %s225 = smul.addr %s222, 128
      %s226 = sadd.s32 %s224, %s225
      %s227 = smul.addr %s226, 8
      %s228 = scalar_lea.vmem %s4, %s227
      %v230 = vld [vmem:[%s220] sm:$0xff]
      %v231 = vld [vmem:[%s220 + $0x8] sm:$0xff]
      %v232 = vld [vmem:[%s220 + $0x10] sm:$0xff]
      %v233 = vld [vmem:[%s220 + $0x18] sm:$0xff]
      %v234 = vpack.c.bf16 %v231, %v230
      %v235 = vpack.c.bf16 %v233, %v232
      %v236 = vld [vmem:[%s1] sm:$0xf]
      %v237 = vld [vmem:[%s1 + $0x4] sm:$0xf]
      %v238 = vld [vmem:[%s1 + $0x8] sm:$0xf]
      %v239 = vld [vmem:[%s1 + $0xc] sm:$0xf]
      %v240 = vld [vmem:[%s1 + $0x10] sm:$0xf]
      %v241 = vld [vmem:[%s1 + $0x14] sm:$0xf]
      %v242 = vld [vmem:[%s1 + $0x18] sm:$0xf]
      %v243 = vld [vmem:[%s1 + $0x1c] sm:$0xf]
      %v244 = vld [vmem:[%s1 + $0x20] sm:$0xf]
      %v245 = vld [vmem:[%s1 + $0x24] sm:$0xf]
      %v246 = vld [vmem:[%s1 + $0x28] sm:$0xf]
      %v247 = vld [vmem:[%s1 + $0x2c] sm:$0xf]
      %v248 = vld [vmem:[%s1 + $0x30] sm:$0xf]
      %v249 = vld [vmem:[%s1 + $0x34] sm:$0xf]
      %v250 = vld [vmem:[%s1 + $0x38] sm:$0xf]
      %v251 = vld [vmem:[%s1 + $0x3c] sm:$0xf]
      %v252 = vld [vmem:[%s1 + $0x40] sm:$0xf]
      %v253 = vld [vmem:[%s1 + $0x44] sm:$0xf]
      %v254 = vld [vmem:[%s1 + $0x48] sm:$0xf]
      %v255 = vld [vmem:[%s1 + $0x4c] sm:$0xf]
      %v256 = vld [vmem:[%s1 + $0x50] sm:$0xf]
      %v257 = vld [vmem:[%s1 + $0x54] sm:$0xf]
      %v258 = vld [vmem:[%s1 + $0x58] sm:$0xf]
      %v259 = vld [vmem:[%s1 + $0x5c] sm:$0xf]
      %v260 = vld [vmem:[%s1 + $0x60] sm:$0xf]
      %v261 = vld [vmem:[%s1 + $0x64] sm:$0xf]
      %v262 = vld [vmem:[%s1 + $0x68] sm:$0xf]
      %v263 = vld [vmem:[%s1 + $0x6c] sm:$0xf]
      %v264 = vld [vmem:[%s1 + $0x70] sm:$0xf]
      %v265 = vld [vmem:[%s1 + $0x74] sm:$0xf]
      %v266 = vld [vmem:[%s1 + $0x78] sm:$0xf]
      %v267 = vld [vmem:[%s1 + $0x7c] sm:$0xf]
      %v268 = vld [vmem:[%s1 + $0x80] sm:$0xf]
      %v269 = vld [vmem:[%s1 + $0x84] sm:$0xf]
      %v270 = vld [vmem:[%s1 + $0x88] sm:$0xf]
      %v271 = vld [vmem:[%s1 + $0x8c] sm:$0xf]
      %v272 = vld [vmem:[%s1 + $0x90] sm:$0xf]
      %v273 = vld [vmem:[%s1 + $0x94] sm:$0xf]
      %v274 = vld [vmem:[%s1 + $0x98] sm:$0xf]
      %v275 = vld [vmem:[%s1 + $0x9c] sm:$0xf]
      %v276 = vld [vmem:[%s1 + $0xa0] sm:$0xf]
      %v277 = vld [vmem:[%s1 + $0xa4] sm:$0xf]
      %v278 = vld [vmem:[%s1 + $0xa8] sm:$0xf]
      %v279 = vld [vmem:[%s1 + $0xac] sm:$0xf]
      %v280 = vld [vmem:[%s1 + $0xb0] sm:$0xf]
      %v281 = vld [vmem:[%s1 + $0xb4] sm:$0xf]
      %v282 = vld [vmem:[%s1 + $0xb8] sm:$0xf]
      %v283 = vld [vmem:[%s1 + $0xbc] sm:$0xf]
      %v284 = vld [vmem:[%s1 + $0xc0] sm:$0xf]
      %v285 = vld [vmem:[%s1 + $0xc4] sm:$0xf]
      %v286 = vld [vmem:[%s1 + $0xc8] sm:$0xf]
      %v287 = vld [vmem:[%s1 + $0xcc] sm:$0xf]
      %v288 = vld [vmem:[%s1 + $0xd0] sm:$0xf]
      %v289 = vld [vmem:[%s1 + $0xd4] sm:$0xf]
      %v290 = vld [vmem:[%s1 + $0xd8] sm:$0xf]
      %v291 = vld [vmem:[%s1 + $0xdc] sm:$0xf]
      %v292 = vld [vmem:[%s1 + $0xe0] sm:$0xf]
      %v293 = vld [vmem:[%s1 + $0xe4] sm:$0xf]
      %v294 = vld [vmem:[%s1 + $0xe8] sm:$0xf]
      %v295 = vld [vmem:[%s1 + $0xec] sm:$0xf]
      %v296 = vld [vmem:[%s1 + $0xf0] sm:$0xf]
      %v297 = vld [vmem:[%s1 + $0xf4] sm:$0xf]
      %v298 = vld [vmem:[%s1 + $0xf8] sm:$0xf]
      %v299 = vld [vmem:[%s1 + $0xfc] sm:$0xf]
      %v300 = vld [vmem:[%s1 + $0x100] sm:$0xf]
      %v301 = vld [vmem:[%s1 + $0x104] sm:$0xf]
      %v302 = vld [vmem:[%s1 + $0x108] sm:$0xf]
      %v303 = vld [vmem:[%s1 + $0x10c] sm:$0xf]
      %v304 = vld [vmem:[%s1 + $0x110] sm:$0xf]
      %v305 = vld [vmem:[%s1 + $0x114] sm:$0xf]
      %v306 = vld [vmem:[%s1 + $0x118] sm:$0xf]
      %v307 = vld [vmem:[%s1 + $0x11c] sm:$0xf]
      %v308 = vld [vmem:[%s1 + $0x120] sm:$0xf]
      %v309 = vld [vmem:[%s1 + $0x124] sm:$0xf]
      %v310 = vld [vmem:[%s1 + $0x128] sm:$0xf]
      %v311 = vld [vmem:[%s1 + $0x12c] sm:$0xf]
      %v312 = vld [vmem:[%s1 + $0x130] sm:$0xf]
      %v313 = vld [vmem:[%s1 + $0x134] sm:$0xf]
      %v314 = vld [vmem:[%s1 + $0x138] sm:$0xf]
      %v315 = vld [vmem:[%s1 + $0x13c] sm:$0xf]
      %v316 = vld [vmem:[%s1 + $0x140] sm:$0xf]
      %v317 = vld [vmem:[%s1 + $0x144] sm:$0xf]
      %v318 = vld [vmem:[%s1 + $0x148] sm:$0xf]
      %v319 = vld [vmem:[%s1 + $0x14c] sm:$0xf]
      %v320 = vld [vmem:[%s1 + $0x150] sm:$0xf]
      %v321 = vld [vmem:[%s1 + $0x154] sm:$0xf]
      %v322 = vld [vmem:[%s1 + $0x158] sm:$0xf]
      %v323 = vld [vmem:[%s1 + $0x15c] sm:$0xf]
      %v324 = vld [vmem:[%s1 + $0x160] sm:$0xf]
      %v325 = vld [vmem:[%s1 + $0x164] sm:$0xf]
      %v326 = vld [vmem:[%s1 + $0x168] sm:$0xf]
      %v327 = vld [vmem:[%s1 + $0x16c] sm:$0xf]
      %v328 = vld [vmem:[%s1 + $0x170] sm:$0xf]
      %v329 = vld [vmem:[%s1 + $0x174] sm:$0xf]
      %v330 = vld [vmem:[%s1 + $0x178] sm:$0xf]
      %v331 = vld [vmem:[%s1 + $0x17c] sm:$0xf]
      %v332 = vld [vmem:[%s1 + $0x180] sm:$0xf]
      %v333 = vld [vmem:[%s1 + $0x184] sm:$0xf]
      %v334 = vld [vmem:[%s1 + $0x188] sm:$0xf]
      %v335 = vld [vmem:[%s1 + $0x18c] sm:$0xf]
      %v336 = vld [vmem:[%s1 + $0x190] sm:$0xf]
      %v337 = vld [vmem:[%s1 + $0x194] sm:$0xf]
      %v338 = vld [vmem:[%s1 + $0x198] sm:$0xf]
      %v339 = vld [vmem:[%s1 + $0x19c] sm:$0xf]
      %v340 = vld [vmem:[%s1 + $0x1a0] sm:$0xf]
      %v341 = vld [vmem:[%s1 + $0x1a4] sm:$0xf]
      %v342 = vld [vmem:[%s1 + $0x1a8] sm:$0xf]
      %v343 = vld [vmem:[%s1 + $0x1ac] sm:$0xf]
      %v344 = vld [vmem:[%s1 + $0x1b0] sm:$0xf]
      %v345 = vld [vmem:[%s1 + $0x1b4] sm:$0xf]
      %v346 = vld [vmem:[%s1 + $0x1b8] sm:$0xf]
      %v347 = vld [vmem:[%s1 + $0x1bc] sm:$0xf]
      %v348 = vld [vmem:[%s1 + $0x1c0] sm:$0xf]
      %v349 = vld [vmem:[%s1 + $0x1c4] sm:$0xf]
      %v350 = vld [vmem:[%s1 + $0x1c8] sm:$0xf]
      %v351 = vld [vmem:[%s1 + $0x1cc] sm:$0xf]
      %v352 = vld [vmem:[%s1 + $0x1d0] sm:$0xf]
      %v353 = vld [vmem:[%s1 + $0x1d4] sm:$0xf]
      %v354 = vld [vmem:[%s1 + $0x1d8] sm:$0xf]
      %v355 = vld [vmem:[%s1 + $0x1dc] sm:$0xf]
      %v356 = vld [vmem:[%s1 + $0x1e0] sm:$0xf]
      %v357 = vld [vmem:[%s1 + $0x1e4] sm:$0xf]
      %v358 = vld [vmem:[%s1 + $0x1e8] sm:$0xf]
      %v359 = vld [vmem:[%s1 + $0x1ec] sm:$0xf]
      %v360 = vld [vmem:[%s1 + $0x1f0] sm:$0xf]
      %v361 = vld [vmem:[%s1 + $0x1f4] sm:$0xf]
      %v362 = vld [vmem:[%s1 + $0x1f8] sm:$0xf]
      %v363 = vld [vmem:[%s1 + $0x1fc] sm:$0xf]
      %v364 = vld [vmem:[%s2] sm:$0xff]
      %v365 = vld [vmem:[%s2 + $0x8] sm:$0xff]
      %v366 = vld [vmem:[%s2 + $0x10] sm:$0xff]
      %v367 = vld [vmem:[%s2 + $0x18] sm:$0xff]
      %v368 = vld [vmem:[%s2 + $0x20] sm:$0xff]
      %v369 = vld [vmem:[%s2 + $0x28] sm:$0xff]
      %v370 = vld [vmem:[%s2 + $0x30] sm:$0xff]
      %v371 = vld [vmem:[%s2 + $0x38] sm:$0xff]
      %v372 = vld [vmem:[%s2 + $0x40] sm:$0xff]
      %v373 = vld [vmem:[%s2 + $0x48] sm:$0xff]
      %v374 = vld [vmem:[%s2 + $0x50] sm:$0xff]
      %v375 = vld [vmem:[%s2 + $0x58] sm:$0xff]
      %v376 = vld [vmem:[%s2 + $0x60] sm:$0xff]
      %v377 = vld [vmem:[%s2 + $0x68] sm:$0xff]
      %v378 = vld [vmem:[%s2 + $0x70] sm:$0xff]
      %v379 = vld [vmem:[%s2 + $0x78] sm:$0xff]
      %v380 = vld [vmem:[%s2 + $0x80] sm:$0xff]
      %v381 = vld [vmem:[%s2 + $0x88] sm:$0xff]
      %v382 = vld [vmem:[%s2 + $0x90] sm:$0xff]
      %v383 = vld [vmem:[%s2 + $0x98] sm:$0xff]
      %v384 = vld [vmem:[%s2 + $0xa0] sm:$0xff]
      %v385 = vld [vmem:[%s2 + $0xa8] sm:$0xff]
      %v386 = vld [vmem:[%s2 + $0xb0] sm:$0xff]
      %v387 = vld [vmem:[%s2 + $0xb8] sm:$0xff]
      %v388 = vld [vmem:[%s2 + $0xc0] sm:$0xff]
      %v389 = vld [vmem:[%s2 + $0xc8] sm:$0xff]
      %v390 = vld [vmem:[%s2 + $0xd0] sm:$0xff]
      %v391 = vld [vmem:[%s2 + $0xd8] sm:$0xff]
      %v392 = vld [vmem:[%s2 + $0xe0] sm:$0xff]
      %v393 = vld [vmem:[%s2 + $0xe8] sm:$0xff]
      %v394 = vld [vmem:[%s2 + $0xf0] sm:$0xff]
      %v395 = vld [vmem:[%s2 + $0xf8] sm:$0xff]
      %v396 = vld [vmem:[%s2 + $0x100] sm:$0xff]
      %v397 = vld [vmem:[%s2 + $0x108] sm:$0xff]
      %v398 = vld [vmem:[%s2 + $0x110] sm:$0xff]
      %v399 = vld [vmem:[%s2 + $0x118] sm:$0xff]
      %v400 = vld [vmem:[%s2 + $0x120] sm:$0xff]
      %v401 = vld [vmem:[%s2 + $0x128] sm:$0xff]
      %v402 = vld [vmem:[%s2 + $0x130] sm:$0xff]
      %v403 = vld [vmem:[%s2 + $0x138] sm:$0xff]
      %v404 = vld [vmem:[%s2 + $0x140] sm:$0xff]
      %v405 = vld [vmem:[%s2 + $0x148] sm:$0xff]
      %v406 = vld [vmem:[%s2 + $0x150] sm:$0xff]
      %v407 = vld [vmem:[%s2 + $0x158] sm:$0xff]
      %v408 = vld [vmem:[%s2 + $0x160] sm:$0xff]
      %v409 = vld [vmem:[%s2 + $0x168] sm:$0xff]
      %v410 = vld [vmem:[%s2 + $0x170] sm:$0xff]
      %v411 = vld [vmem:[%s2 + $0x178] sm:$0xff]
      %v412 = vld [vmem:[%s2 + $0x180] sm:$0xff]
      %v413 = vld [vmem:[%s2 + $0x188] sm:$0xff]
      %v414 = vld [vmem:[%s2 + $0x190] sm:$0xff]
      %v415 = vld [vmem:[%s2 + $0x198] sm:$0xff]
      %v416 = vld [vmem:[%s2 + $0x1a0] sm:$0xff]
      %v417 = vld [vmem:[%s2 + $0x1a8] sm:$0xff]
      %v418 = vld [vmem:[%s2 + $0x1b0] sm:$0xff]
      %v419 = vld [vmem:[%s2 + $0x1b8] sm:$0xff]
      %v420 = vld [vmem:[%s2 + $0x1c0] sm:$0xff]
      %v421 = vld [vmem:[%s2 + $0x1c8] sm:$0xff]
      %v422 = vld [vmem:[%s2 + $0x1d0] sm:$0xff]
      %v423 = vld [vmem:[%s2 + $0x1d8] sm:$0xff]
      %v424 = vld [vmem:[%s2 + $0x1e0] sm:$0xff]
      %v425 = vld [vmem:[%s2 + $0x1e8] sm:$0xff]
      %v426 = vld [vmem:[%s2 + $0x1f0] sm:$0xff]
      %v427 = vld [vmem:[%s2 + $0x1f8] sm:$0xff]
      %v428 = vld [vmem:[%s2 + $0x200] sm:$0xff]
      %v429 = vld [vmem:[%s2 + $0x208] sm:$0xff]
      %v430 = vld [vmem:[%s2 + $0x210] sm:$0xff]
      %v431 = vld [vmem:[%s2 + $0x218] sm:$0xff]
      %v432 = vld [vmem:[%s2 + $0x220] sm:$0xff]
      %v433 = vld [vmem:[%s2 + $0x228] sm:$0xff]
      %v434 = vld [vmem:[%s2 + $0x230] sm:$0xff]
      %v435 = vld [vmem:[%s2 + $0x238] sm:$0xff]
      %v436 = vld [vmem:[%s2 + $0x240] sm:$0xff]
      %v437 = vld [vmem:[%s2 + $0x248] sm:$0xff]
      %v438 = vld [vmem:[%s2 + $0x250] sm:$0xff]
      %v439 = vld [vmem:[%s2 + $0x258] sm:$0xff]
      %v440 = vld [vmem:[%s2 + $0x260] sm:$0xff]
      %v441 = vld [vmem:[%s2 + $0x268] sm:$0xff]
      %v442 = vld [vmem:[%s2 + $0x270] sm:$0xff]
      %v443 = vld [vmem:[%s2 + $0x278] sm:$0xff]
      %v444 = vld [vmem:[%s2 + $0x280] sm:$0xff]
      %v445 = vld [vmem:[%s2 + $0x288] sm:$0xff]
      %v446 = vld [vmem:[%s2 + $0x290] sm:$0xff]
      %v447 = vld [vmem:[%s2 + $0x298] sm:$0xff]
      %v448 = vld [vmem:[%s2 + $0x2a0] sm:$0xff]
      %v449 = vld [vmem:[%s2 + $0x2a8] sm:$0xff]
      %v450 = vld [vmem:[%s2 + $0x2b0] sm:$0xff]
      %v451 = vld [vmem:[%s2 + $0x2b8] sm:$0xff]
      %v452 = vld [vmem:[%s2 + $0x2c0] sm:$0xff]
      %v453 = vld [vmem:[%s2 + $0x2c8] sm:$0xff]
      %v454 = vld [vmem:[%s2 + $0x2d0] sm:$0xff]
      %v455 = vld [vmem:[%s2 + $0x2d8] sm:$0xff]
      %v456 = vld [vmem:[%s2 + $0x2e0] sm:$0xff]
      %v457 = vld [vmem:[%s2 + $0x2e8] sm:$0xff]
      %v458 = vld [vmem:[%s2 + $0x2f0] sm:$0xff]
      %v459 = vld [vmem:[%s2 + $0x2f8] sm:$0xff]
      %v460 = vld [vmem:[%s2 + $0x300] sm:$0xff]
      %v461 = vld [vmem:[%s2 + $0x308] sm:$0xff]
      %v462 = vld [vmem:[%s2 + $0x310] sm:$0xff]
      %v463 = vld [vmem:[%s2 + $0x318] sm:$0xff]
      %v464 = vld [vmem:[%s2 + $0x320] sm:$0xff]
      %v465 = vld [vmem:[%s2 + $0x328] sm:$0xff]
      %v466 = vld [vmem:[%s2 + $0x330] sm:$0xff]
      %v467 = vld [vmem:[%s2 + $0x338] sm:$0xff]
      %v468 = vld [vmem:[%s2 + $0x340] sm:$0xff]
      %v469 = vld [vmem:[%s2 + $0x348] sm:$0xff]
      %v470 = vld [vmem:[%s2 + $0x350] sm:$0xff]
      %v471 = vld [vmem:[%s2 + $0x358] sm:$0xff]
      %v472 = vld [vmem:[%s2 + $0x360] sm:$0xff]
      %v473 = vld [vmem:[%s2 + $0x368] sm:$0xff]
      %v474 = vld [vmem:[%s2 + $0x370] sm:$0xff]
      %v475 = vld [vmem:[%s2 + $0x378] sm:$0xff]
      %v476 = vld [vmem:[%s2 + $0x380] sm:$0xff]
      %v477 = vld [vmem:[%s2 + $0x388] sm:$0xff]
      %v478 = vld [vmem:[%s2 + $0x390] sm:$0xff]
      %v479 = vld [vmem:[%s2 + $0x398] sm:$0xff]
      %v480 = vld [vmem:[%s2 + $0x3a0] sm:$0xff]
      %v481 = vld [vmem:[%s2 + $0x3a8] sm:$0xff]
      %v482 = vld [vmem:[%s2 + $0x3b0] sm:$0xff]
      %v483 = vld [vmem:[%s2 + $0x3b8] sm:$0xff]
      %v484 = vld [vmem:[%s2 + $0x3c0] sm:$0xff]
      %v485 = vld [vmem:[%s2 + $0x3c8] sm:$0xff]
      %v486 = vld [vmem:[%s2 + $0x3d0] sm:$0xff]
      %v487 = vld [vmem:[%s2 + $0x3d8] sm:$0xff]
      %v488 = vld [vmem:[%s2 + $0x3e0] sm:$0xff]
      %v489 = vld [vmem:[%s2 + $0x3e8] sm:$0xff]
      %v490 = vld [vmem:[%s2 + $0x3f0] sm:$0xff]
      %v491 = vld [vmem:[%s2 + $0x3f8] sm:$0xff]
      %493 = vset.pattern.permute.xlu0 0
      %494 = vperm.xlu0 %493, %v364
      %v495 = vpop.permute.xlu0 %494
      %498 = vset.pattern.permute.xlu0 0
      %499 = vperm.xlu0 %498, %v365
      %v500 = vpop.permute.xlu0 %499
      %503 = vset.pattern.permute.xlu0 0
      %504 = vperm.xlu0 %503, %v366
      %v505 = vpop.permute.xlu0 %504
      %508 = vset.pattern.permute.xlu0 0
      %509 = vperm.xlu0 %508, %v367
      %v510 = vpop.permute.xlu0 %509
      %513 = vset.pattern.permute.xlu0 0
      %514 = vperm.xlu0 %513, %v368
      %v515 = vpop.permute.xlu0 %514
      %518 = vset.pattern.permute.xlu0 0
      %519 = vperm.xlu0 %518, %v369
      %v520 = vpop.permute.xlu0 %519
      %523 = vset.pattern.permute.xlu0 0
      %524 = vperm.xlu0 %523, %v370
      %v525 = vpop.permute.xlu0 %524
      %528 = vset.pattern.permute.xlu0 0
      %529 = vperm.xlu0 %528, %v371
      %v530 = vpop.permute.xlu0 %529
      %533 = vset.pattern.permute.xlu0 0
      %534 = vperm.xlu0 %533, %v372
      %v535 = vpop.permute.xlu0 %534
      %538 = vset.pattern.permute.xlu0 0
      %539 = vperm.xlu0 %538, %v373
      %v540 = vpop.permute.xlu0 %539
      %543 = vset.pattern.permute.xlu0 0
      %544 = vperm.xlu0 %543, %v374
      %v545 = vpop.permute.xlu0 %544
      %548 = vset.pattern.permute.xlu0 0
      %549 = vperm.xlu0 %548, %v375
      %v550 = vpop.permute.xlu0 %549
      %553 = vset.pattern.permute.xlu0 0
      %554 = vperm.xlu0 %553, %v376
      %v555 = vpop.permute.xlu0 %554
      %558 = vset.pattern.permute.xlu0 0
      %559 = vperm.xlu0 %558, %v377
      %v560 = vpop.permute.xlu0 %559
      %563 = vset.pattern.permute.xlu0 0
      %564 = vperm.xlu0 %563, %v378
      %v565 = vpop.permute.xlu0 %564
      %568 = vset.pattern.permute.xlu0 0
      %569 = vperm.xlu0 %568, %v379
      %v570 = vpop.permute.xlu0 %569
      %573 = vset.pattern.permute.xlu0 0
      %574 = vperm.xlu0 %573, %v380
      %v575 = vpop.permute.xlu0 %574
      %578 = vset.pattern.permute.xlu0 0
      %579 = vperm.xlu0 %578, %v381
      %v580 = vpop.permute.xlu0 %579
      %583 = vset.pattern.permute.xlu0 0
      %584 = vperm.xlu0 %583, %v382
      %v585 = vpop.permute.xlu0 %584
      %588 = vset.pattern.permute.xlu0 0
      %589 = vperm.xlu0 %588, %v383
      %v590 = vpop.permute.xlu0 %589
      %593 = vset.pattern.permute.xlu0 0
      %594 = vperm.xlu0 %593, %v384
      %v595 = vpop.permute.xlu0 %594
      %598 = vset.pattern.permute.xlu0 0
      %599 = vperm.xlu0 %598, %v385
      %v600 = vpop.permute.xlu0 %599
      %603 = vset.pattern.permute.xlu0 0
      %604 = vperm.xlu0 %603, %v386
      %v605 = vpop.permute.xlu0 %604
      %608 = vset.pattern.permute.xlu0 0
      %609 = vperm.xlu0 %608, %v387
      %v610 = vpop.permute.xlu0 %609
      %613 = vset.pattern.permute.xlu0 0
      %614 = vperm.xlu0 %613, %v388
      %v615 = vpop.permute.xlu0 %614
      %618 = vset.pattern.permute.xlu0 0
      %619 = vperm.xlu0 %618, %v389
      %v620 = vpop.permute.xlu0 %619
      %623 = vset.pattern.permute.xlu0 0
      %624 = vperm.xlu0 %623, %v390
      %v625 = vpop.permute.xlu0 %624
      %628 = vset.pattern.permute.xlu0 0
      %629 = vperm.xlu0 %628, %v391
      %v630 = vpop.permute.xlu0 %629
      %633 = vset.pattern.permute.xlu0 0
      %634 = vperm.xlu0 %633, %v392
      %v635 = vpop.permute.xlu0 %634
      %638 = vset.pattern.permute.xlu0 0
      %639 = vperm.xlu0 %638, %v393
      %v640 = vpop.permute.xlu0 %639
      %643 = vset.pattern.permute.xlu0 0
      %644 = vperm.xlu0 %643, %v394
      %v645 = vpop.permute.xlu0 %644
      %648 = vset.pattern.permute.xlu0 0
      %649 = vperm.xlu0 %648, %v395
      %v650 = vpop.permute.xlu0 %649
      %653 = vset.pattern.permute.xlu0 0
      %654 = vperm.xlu0 %653, %v396
      %v655 = vpop.permute.xlu0 %654
      %658 = vset.pattern.permute.xlu0 0
      %659 = vperm.xlu0 %658, %v397
      %v660 = vpop.permute.xlu0 %659
      %663 = vset.pattern.permute.xlu0 0
      %664 = vperm.xlu0 %663, %v398
      %v665 = vpop.permute.xlu0 %664
      %668 = vset.pattern.permute.xlu0 0
      %669 = vperm.xlu0 %668, %v399
      %v670 = vpop.permute.xlu0 %669
      %673 = vset.pattern.permute.xlu0 0
      %674 = vperm.xlu0 %673, %v400
      %v675 = vpop.permute.xlu0 %674
      %678 = vset.pattern.permute.xlu0 0
      %679 = vperm.xlu0 %678, %v401
      %v680 = vpop.permute.xlu0 %679
      %683 = vset.pattern.permute.xlu0 0
      %684 = vperm.xlu0 %683, %v402
      %v685 = vpop.permute.xlu0 %684
      %688 = vset.pattern.permute.xlu0 0
      %689 = vperm.xlu0 %688, %v403
      %v690 = vpop.permute.xlu0 %689
      %693 = vset.pattern.permute.xlu0 0
      %694 = vperm.xlu0 %693, %v404
      %v695 = vpop.permute.xlu0 %694
      %698 = vset.pattern.permute.xlu0 0
      %699 = vperm.xlu0 %698, %v405
      %v700 = vpop.permute.xlu0 %699
      %703 = vset.pattern.permute.xlu0 0
      %704 = vperm.xlu0 %703, %v406
      %v705 = vpop.permute.xlu0 %704
      %708 = vset.pattern.permute.xlu0 0
      %709 = vperm.xlu0 %708, %v407
      %v710 = vpop.permute.xlu0 %709
      %713 = vset.pattern.permute.xlu0 0
      %714 = vperm.xlu0 %713, %v408
      %v715 = vpop.permute.xlu0 %714
      %718 = vset.pattern.permute.xlu0 0
      %719 = vperm.xlu0 %718, %v409
      %v720 = vpop.permute.xlu0 %719
      %723 = vset.pattern.permute.xlu0 0
      %724 = vperm.xlu0 %723, %v410
      %v725 = vpop.permute.xlu0 %724
      %728 = vset.pattern.permute.xlu0 0
      %729 = vperm.xlu0 %728, %v411
      %v730 = vpop.permute.xlu0 %729
      %733 = vset.pattern.permute.xlu0 0
      %734 = vperm.xlu0 %733, %v412
      %v735 = vpop.permute.xlu0 %734
      %738 = vset.pattern.permute.xlu0 0
      %739 = vperm.xlu0 %738, %v413
      %v740 = vpop.permute.xlu0 %739
      %743 = vset.pattern.permute.xlu0 0
      %744 = vperm.xlu0 %743, %v414
      %v745 = vpop.permute.xlu0 %744
      %748 = vset.pattern.permute.xlu0 0
      %749 = vperm.xlu0 %748, %v415
      %v750 = vpop.permute.xlu0 %749
      %753 = vset.pattern.permute.xlu0 0
      %754 = vperm.xlu0 %753, %v416
      %v755 = vpop.permute.xlu0 %754
      %758 = vset.pattern.permute.xlu0 0
      %759 = vperm.xlu0 %758, %v417
      %v760 = vpop.permute.xlu0 %759
      %763 = vset.pattern.permute.xlu0 0
      %764 = vperm.xlu0 %763, %v418
      %v765 = vpop.permute.xlu0 %764
      %768 = vset.pattern.permute.xlu0 0
      %769 = vperm.xlu0 %768, %v419
      %v770 = vpop.permute.xlu0 %769
      %773 = vset.pattern.permute.xlu0 0
      %774 = vperm.xlu0 %773, %v420
      %v775 = vpop.permute.xlu0 %774
      %778 = vset.pattern.permute.xlu0 0
      %779 = vperm.xlu0 %778, %v421
      %v780 = vpop.permute.xlu0 %779
      %783 = vset.pattern.permute.xlu0 0
      %784 = vperm.xlu0 %783, %v422
      %v785 = vpop.permute.xlu0 %784
      %788 = vset.pattern.permute.xlu0 0
      %789 = vperm.xlu0 %788, %v423
      %v790 = vpop.permute.xlu0 %789
      %793 = vset.pattern.permute.xlu0 0
      %794 = vperm.xlu0 %793, %v424
      %v795 = vpop.permute.xlu0 %794
      %798 = vset.pattern.permute.xlu0 0
      %799 = vperm.xlu0 %798, %v425
      %v800 = vpop.permute.xlu0 %799
      %803 = vset.pattern.permute.xlu0 0
      %804 = vperm.xlu0 %803, %v426
      %v805 = vpop.permute.xlu0 %804
      %808 = vset.pattern.permute.xlu0 0
      %809 = vperm.xlu0 %808, %v427
      %v810 = vpop.permute.xlu0 %809
      %813 = vset.pattern.permute.xlu0 0
      %814 = vperm.xlu0 %813, %v428
      %v815 = vpop.permute.xlu0 %814
      %818 = vset.pattern.permute.xlu0 0
      %819 = vperm.xlu0 %818, %v429
      %v820 = vpop.permute.xlu0 %819
      %823 = vset.pattern.permute.xlu0 0
      %824 = vperm.xlu0 %823, %v430
      %v825 = vpop.permute.xlu0 %824
      %828 = vset.pattern.permute.xlu0 0
      %829 = vperm.xlu0 %828, %v431
      %v830 = vpop.permute.xlu0 %829
      %833 = vset.pattern.permute.xlu0 0
      %834 = vperm.xlu0 %833, %v432
      %v835 = vpop.permute.xlu0 %834
      %838 = vset.pattern.permute.xlu0 0
      %839 = vperm.xlu0 %838, %v433
      %v840 = vpop.permute.xlu0 %839
      %843 = vset.pattern.permute.xlu0 0
      %844 = vperm.xlu0 %843, %v434
      %v845 = vpop.permute.xlu0 %844
      %848 = vset.pattern.permute.xlu0 0
      %849 = vperm.xlu0 %848, %v435
      %v850 = vpop.permute.xlu0 %849
      %853 = vset.pattern.permute.xlu0 0
      %854 = vperm.xlu0 %853, %v436
      %v855 = vpop.permute.xlu0 %854
      %858 = vset.pattern.permute.xlu0 0
      %859 = vperm.xlu0 %858, %v437
      %v860 = vpop.permute.xlu0 %859
      %863 = vset.pattern.permute.xlu0 0
      %864 = vperm.xlu0 %863, %v438
      %v865 = vpop.permute.xlu0 %864
      %868 = vset.pattern.permute.xlu0 0
      %869 = vperm.xlu0 %868, %v439
      %v870 = vpop.permute.xlu0 %869
      %873 = vset.pattern.permute.xlu0 0
      %874 = vperm.xlu0 %873, %v440
      %v875 = vpop.permute.xlu0 %874
      %878 = vset.pattern.permute.xlu0 0
      %879 = vperm.xlu0 %878, %v441
      %v880 = vpop.permute.xlu0 %879
      %883 = vset.pattern.permute.xlu0 0
      %884 = vperm.xlu0 %883, %v442
      %v885 = vpop.permute.xlu0 %884
      %888 = vset.pattern.permute.xlu0 0
      %889 = vperm.xlu0 %888, %v443
      %v890 = vpop.permute.xlu0 %889
      %893 = vset.pattern.permute.xlu0 0
      %894 = vperm.xlu0 %893, %v444
      %v895 = vpop.permute.xlu0 %894
      %898 = vset.pattern.permute.xlu0 0
      %899 = vperm.xlu0 %898, %v445
      %v900 = vpop.permute.xlu0 %899
      %903 = vset.pattern.permute.xlu0 0
      %904 = vperm.xlu0 %903, %v446
      %v905 = vpop.permute.xlu0 %904
      %908 = vset.pattern.permute.xlu0 0
      %909 = vperm.xlu0 %908, %v447
      %v910 = vpop.permute.xlu0 %909
      %913 = vset.pattern.permute.xlu0 0
      %914 = vperm.xlu0 %913, %v448
      %v915 = vpop.permute.xlu0 %914
      %918 = vset.pattern.permute.xlu0 0
      %919 = vperm.xlu0 %918, %v449
      %v920 = vpop.permute.xlu0 %919
      %923 = vset.pattern.permute.xlu0 0
      %924 = vperm.xlu0 %923, %v450
      %v925 = vpop.permute.xlu0 %924
      %928 = vset.pattern.permute.xlu0 0
      %929 = vperm.xlu0 %928, %v451
      %v930 = vpop.permute.xlu0 %929
      %933 = vset.pattern.permute.xlu0 0
      %934 = vperm.xlu0 %933, %v452
      %v935 = vpop.permute.xlu0 %934
      %938 = vset.pattern.permute.xlu0 0
      %939 = vperm.xlu0 %938, %v453
      %v940 = vpop.permute.xlu0 %939
      %943 = vset.pattern.permute.xlu0 0
      %944 = vperm.xlu0 %943, %v454
      %v945 = vpop.permute.xlu0 %944
      %948 = vset.pattern.permute.xlu0 0
      %949 = vperm.xlu0 %948, %v455
      %v950 = vpop.permute.xlu0 %949
      %953 = vset.pattern.permute.xlu0 0
      %954 = vperm.xlu0 %953, %v456
      %v955 = vpop.permute.xlu0 %954
      %958 = vset.pattern.permute.xlu0 0
      %959 = vperm.xlu0 %958, %v457
      %v960 = vpop.permute.xlu0 %959
      %963 = vset.pattern.permute.xlu0 0
      %964 = vperm.xlu0 %963, %v458
      %v965 = vpop.permute.xlu0 %964
      %968 = vset.pattern.permute.xlu0 0
      %969 = vperm.xlu0 %968, %v459
      %v970 = vpop.permute.xlu0 %969
      %973 = vset.pattern.permute.xlu0 0
      %974 = vperm.xlu0 %973, %v460
      %v975 = vpop.permute.xlu0 %974
      %978 = vset.pattern.permute.xlu0 0
      %979 = vperm.xlu0 %978, %v461
      %v980 = vpop.permute.xlu0 %979
      %983 = vset.pattern.permute.xlu0 0
      %984 = vperm.xlu0 %983, %v462
      %v985 = vpop.permute.xlu0 %984
      %988 = vset.pattern.permute.xlu0 0
      %989 = vperm.xlu0 %988, %v463
      %v990 = vpop.permute.xlu0 %989
      %993 = vset.pattern.permute.xlu0 0
      %994 = vperm.xlu0 %993, %v464
      %v995 = vpop.permute.xlu0 %994
      %998 = vset.pattern.permute.xlu0 0
      %999 = vperm.xlu0 %998, %v465
      %v1000 = vpop.permute.xlu0 %999
      %1003 = vset.pattern.permute.xlu0 0
      %1004 = vperm.xlu0 %1003, %v466
      %v1005 = vpop.permute.xlu0 %1004
      %1008 = vset.pattern.permute.xlu0 0
      %1009 = vperm.xlu0 %1008, %v467
      %v1010 = vpop.permute.xlu0 %1009
      %1013 = vset.pattern.permute.xlu0 0
      %1014 = vperm.xlu0 %1013, %v468
      %v1015 = vpop.permute.xlu0 %1014
      %1018 = vset.pattern.permute.xlu0 0
      %1019 = vperm.xlu0 %1018, %v469
      %v1020 = vpop.permute.xlu0 %1019
      %1023 = vset.pattern.permute.xlu0 0
      %1024 = vperm.xlu0 %1023, %v470
      %v1025 = vpop.permute.xlu0 %1024
      %1028 = vset.pattern.permute.xlu0 0
      %1029 = vperm.xlu0 %1028, %v471
      %v1030 = vpop.permute.xlu0 %1029
      %1033 = vset.pattern.permute.xlu0 0
      %1034 = vperm.xlu0 %1033, %v472
      %v1035 = vpop.permute.xlu0 %1034
      %1038 = vset.pattern.permute.xlu0 0
      %1039 = vperm.xlu0 %1038, %v473
      %v1040 = vpop.permute.xlu0 %1039
      %1043 = vset.pattern.permute.xlu0 0
      %1044 = vperm.xlu0 %1043, %v474
      %v1045 = vpop.permute.xlu0 %1044
      %1048 = vset.pattern.permute.xlu0 0
      %1049 = vperm.xlu0 %1048, %v475
      %v1050 = vpop.permute.xlu0 %1049
      %1053 = vset.pattern.permute.xlu0 0
      %1054 = vperm.xlu0 %1053, %v476
      %v1055 = vpop.permute.xlu0 %1054
      %1058 = vset.pattern.permute.xlu0 0
      %1059 = vperm.xlu0 %1058, %v477
      %v1060 = vpop.permute.xlu0 %1059
      %1063 = vset.pattern.permute.xlu0 0
      %1064 = vperm.xlu0 %1063, %v478
      %v1065 = vpop.permute.xlu0 %1064
      %1068 = vset.pattern.permute.xlu0 0
      %1069 = vperm.xlu0 %1068, %v479
      %v1070 = vpop.permute.xlu0 %1069
      %1073 = vset.pattern.permute.xlu0 0
      %1074 = vperm.xlu0 %1073, %v480
      %v1075 = vpop.permute.xlu0 %1074
      %1078 = vset.pattern.permute.xlu0 0
      %1079 = vperm.xlu0 %1078, %v481
      %v1080 = vpop.permute.xlu0 %1079
      %1083 = vset.pattern.permute.xlu0 0
      %1084 = vperm.xlu0 %1083, %v482
      %v1085 = vpop.permute.xlu0 %1084
      %1088 = vset.pattern.permute.xlu0 0
      %1089 = vperm.xlu0 %1088, %v483
      %v1090 = vpop.permute.xlu0 %1089
      %1093 = vset.pattern.permute.xlu0 0
      %1094 = vperm.xlu0 %1093, %v484
      %v1095 = vpop.permute.xlu0 %1094
      %1098 = vset.pattern.permute.xlu0 0
      %1099 = vperm.xlu0 %1098, %v485
      %v1100 = vpop.permute.xlu0 %1099
      %1103 = vset.pattern.permute.xlu0 0
      %1104 = vperm.xlu0 %1103, %v486
      %v1105 = vpop.permute.xlu0 %1104
      %1108 = vset.pattern.permute.xlu0 0
      %1109 = vperm.xlu0 %1108, %v487
      %v1110 = vpop.permute.xlu0 %1109
      %1113 = vset.pattern.permute.xlu0 0
      %1114 = vperm.xlu0 %1113, %v488
      %v1115 = vpop.permute.xlu0 %1114
      %1118 = vset.pattern.permute.xlu0 0
      %1119 = vperm.xlu0 %1118, %v489
      %v1120 = vpop.permute.xlu0 %1119
      %1123 = vset.pattern.permute.xlu0 0
      %1124 = vperm.xlu0 %1123, %v490
      %v1125 = vpop.permute.xlu0 %1124
      %1128 = vset.pattern.permute.xlu0 0
      %1129 = vperm.xlu0 %1128, %v491
      %v1130 = vpop.permute.xlu0 %1129
      %v1260 = vunpack.c.l.b16 %v236
      %v1261 = vunpack.c.l.b16 %v237
      %v1262 = vunpack.c.l.b16 %v238
      %v1263 = vunpack.c.l.b16 %v239
      %v1264 = vunpack.c.l.b16 %v240
      %v1265 = vunpack.c.l.b16 %v241
      %v1266 = vunpack.c.l.b16 %v242
      %v1267 = vunpack.c.l.b16 %v243
      %v1268 = vunpack.c.l.b16 %v244
      %v1269 = vunpack.c.l.b16 %v245
      %v1270 = vunpack.c.l.b16 %v246
      %v1271 = vunpack.c.l.b16 %v247
      %v1272 = vunpack.c.l.b16 %v248
      %v1273 = vunpack.c.l.b16 %v249
      %v1274 = vunpack.c.l.b16 %v250
      %v1275 = vunpack.c.l.b16 %v251
      %v1276 = vunpack.c.l.b16 %v252
      %v1277 = vunpack.c.l.b16 %v253
      %v1278 = vunpack.c.l.b16 %v254
      %v1279 = vunpack.c.l.b16 %v255
      %v1280 = vunpack.c.l.b16 %v256
      %v1281 = vunpack.c.l.b16 %v257
      %v1282 = vunpack.c.l.b16 %v258
      %v1283 = vunpack.c.l.b16 %v259
      %v1284 = vunpack.c.l.b16 %v260
      %v1285 = vunpack.c.l.b16 %v261
      %v1286 = vunpack.c.l.b16 %v262
      %v1287 = vunpack.c.l.b16 %v263
      %v1288 = vunpack.c.l.b16 %v264
      %v1289 = vunpack.c.l.b16 %v265
      %v1290 = vunpack.c.l.b16 %v266
      %v1291 = vunpack.c.l.b16 %v267
      %v1292 = vunpack.c.l.b16 %v268
      %v1293 = vunpack.c.l.b16 %v269
      %v1294 = vunpack.c.l.b16 %v270
      %v1295 = vunpack.c.l.b16 %v271
      %v1296 = vunpack.c.l.b16 %v272
      %v1297 = vunpack.c.l.b16 %v273
      %v1298 = vunpack.c.l.b16 %v274
      %v1299 = vunpack.c.l.b16 %v275
      %v1300 = vunpack.c.l.b16 %v276
      %v1301 = vunpack.c.l.b16 %v277
      %v1302 = vunpack.c.l.b16 %v278
      %v1303 = vunpack.c.l.b16 %v279
      %v1304 = vunpack.c.l.b16 %v280
      %v1305 = vunpack.c.l.b16 %v281
      %v1306 = vunpack.c.l.b16 %v282
      %v1307 = vunpack.c.l.b16 %v283
      %v1308 = vunpack.c.l.b16 %v284
      %v1309 = vunpack.c.l.b16 %v285
      %v1310 = vunpack.c.l.b16 %v286
      %v1311 = vunpack.c.l.b16 %v287
      %v1312 = vunpack.c.l.b16 %v288
      %v1313 = vunpack.c.l.b16 %v289
      %v1314 = vunpack.c.l.b16 %v290
      %v1315 = vunpack.c.l.b16 %v291
      %v1316 = vunpack.c.l.b16 %v292
      %v1317 = vunpack.c.l.b16 %v293
      %v1318 = vunpack.c.l.b16 %v294
      %v1319 = vunpack.c.l.b16 %v295
      %v1320 = vunpack.c.l.b16 %v296
      %v1321 = vunpack.c.l.b16 %v297
      %v1322 = vunpack.c.l.b16 %v298
      %v1323 = vunpack.c.l.b16 %v299
      %v1324 = vunpack.c.l.b16 %v300
      %v1325 = vunpack.c.l.b16 %v301
      %v1326 = vunpack.c.l.b16 %v302
      %v1327 = vunpack.c.l.b16 %v303
      %v1328 = vunpack.c.l.b16 %v304
      %v1329 = vunpack.c.l.b16 %v305
      %v1330 = vunpack.c.l.b16 %v306
      %v1331 = vunpack.c.l.b16 %v307
      %v1332 = vunpack.c.l.b16 %v308
      %v1333 = vunpack.c.l.b16 %v309
      %v1334 = vunpack.c.l.b16 %v310
      %v1335 = vunpack.c.l.b16 %v311
      %v1336 = vunpack.c.l.b16 %v312
      %v1337 = vunpack.c.l.b16 %v313
      %v1338 = vunpack.c.l.b16 %v314
      %v1339 = vunpack.c.l.b16 %v315
      %v1340 = vunpack.c.l.b16 %v316
      %v1341 = vunpack.c.l.b16 %v317
      %v1342 = vunpack.c.l.b16 %v318
      %v1343 = vunpack.c.l.b16 %v319
      %v1344 = vunpack.c.l.b16 %v320
      %v1345 = vunpack.c.l.b16 %v321
      %v1346 = vunpack.c.l.b16 %v322
      %v1347 = vunpack.c.l.b16 %v323
      %v1348 = vunpack.c.l.b16 %v324
      %v1349 = vunpack.c.l.b16 %v325
      %v1350 = vunpack.c.l.b16 %v326
      %v1351 = vunpack.c.l.b16 %v327
      %v1352 = vunpack.c.l.b16 %v328
      %v1353 = vunpack.c.l.b16 %v329
      %v1354 = vunpack.c.l.b16 %v330
      %v1355 = vunpack.c.l.b16 %v331
      %v1356 = vunpack.c.l.b16 %v332
      %v1357 = vunpack.c.l.b16 %v333
      %v1358 = vunpack.c.l.b16 %v334
      %v1359 = vunpack.c.l.b16 %v335
      %v1360 = vunpack.c.l.b16 %v336
      %v1361 = vunpack.c.l.b16 %v337
      %v1362 = vunpack.c.l.b16 %v338
      %v1363 = vunpack.c.l.b16 %v339
      %v1364 = vunpack.c.l.b16 %v340
      %v1365 = vunpack.c.l.b16 %v341
      %v1366 = vunpack.c.l.b16 %v342
      %v1367 = vunpack.c.l.b16 %v343
      %v1368 = vunpack.c.l.b16 %v344
      %v1369 = vunpack.c.l.b16 %v345
      %v1370 = vunpack.c.l.b16 %v346
      %v1371 = vunpack.c.l.b16 %v347
      %v1372 = vunpack.c.l.b16 %v348
      %v1373 = vunpack.c.l.b16 %v349
      %v1374 = vunpack.c.l.b16 %v350
      %v1375 = vunpack.c.l.b16 %v351
      %v1376 = vunpack.c.l.b16 %v352
      %v1377 = vunpack.c.l.b16 %v353
      %v1378 = vunpack.c.l.b16 %v354
      %v1379 = vunpack.c.l.b16 %v355
      %v1380 = vunpack.c.l.b16 %v356
      %v1381 = vunpack.c.l.b16 %v357
      %v1382 = vunpack.c.l.b16 %v358
      %v1383 = vunpack.c.l.b16 %v359
      %v1384 = vunpack.c.l.b16 %v360
      %v1385 = vunpack.c.l.b16 %v361
      %v1386 = vunpack.c.l.b16 %v362
      %v1387 = vunpack.c.l.b16 %v363
      %v1388 = vpack.c.b16 %v1261, %v1260
      %v1389 = vpack.c.b16 %v1263, %v1262
      %v1390 = vpack.c.b16 %v1265, %v1264
      %v1391 = vpack.c.b16 %v1267, %v1266
      %v1392 = vpack.c.b16 %v1269, %v1268
      %v1393 = vpack.c.b16 %v1271, %v1270
      %v1394 = vpack.c.b16 %v1273, %v1272
      %v1395 = vpack.c.b16 %v1275, %v1274
      %v1396 = vpack.c.b16 %v1277, %v1276
      %v1397 = vpack.c.b16 %v1279, %v1278
      %v1398 = vpack.c.b16 %v1281, %v1280
      %v1399 = vpack.c.b16 %v1283, %v1282
      %v1400 = vpack.c.b16 %v1285, %v1284
      %v1401 = vpack.c.b16 %v1287, %v1286
      %v1402 = vpack.c.b16 %v1289, %v1288
      %v1403 = vpack.c.b16 %v1291, %v1290
      %v1404 = vpack.c.b16 %v1293, %v1292
      %v1405 = vpack.c.b16 %v1295, %v1294
      %v1406 = vpack.c.b16 %v1297, %v1296
      %v1407 = vpack.c.b16 %v1299, %v1298
      %v1408 = vpack.c.b16 %v1301, %v1300
      %v1409 = vpack.c.b16 %v1303, %v1302
      %v1410 = vpack.c.b16 %v1305, %v1304
      %v1411 = vpack.c.b16 %v1307, %v1306
      %v1412 = vpack.c.b16 %v1309, %v1308
      %v1413 = vpack.c.b16 %v1311, %v1310
      %v1414 = vpack.c.b16 %v1313, %v1312
      %v1415 = vpack.c.b16 %v1315, %v1314
      %v1416 = vpack.c.b16 %v1317, %v1316
      %v1417 = vpack.c.b16 %v1319, %v1318
      %v1418 = vpack.c.b16 %v1321, %v1320
      %v1419 = vpack.c.b16 %v1323, %v1322
      %v1420 = vpack.c.b16 %v1325, %v1324
      %v1421 = vpack.c.b16 %v1327, %v1326
      %v1422 = vpack.c.b16 %v1329, %v1328
      %v1423 = vpack.c.b16 %v1331, %v1330
      %v1424 = vpack.c.b16 %v1333, %v1332
      %v1425 = vpack.c.b16 %v1335, %v1334
      %v1426 = vpack.c.b16 %v1337, %v1336
      %v1427 = vpack.c.b16 %v1339, %v1338
      %v1428 = vpack.c.b16 %v1341, %v1340
      %v1429 = vpack.c.b16 %v1343, %v1342
      %v1430 = vpack.c.b16 %v1345, %v1344
      %v1431 = vpack.c.b16 %v1347, %v1346
      %v1432 = vpack.c.b16 %v1349, %v1348
      %v1433 = vpack.c.b16 %v1351, %v1350
      %v1434 = vpack.c.b16 %v1353, %v1352
      %v1435 = vpack.c.b16 %v1355, %v1354
      %v1436 = vpack.c.b16 %v1357, %v1356
      %v1437 = vpack.c.b16 %v1359, %v1358
      %v1438 = vpack.c.b16 %v1361, %v1360
      %v1439 = vpack.c.b16 %v1363, %v1362
      %v1440 = vpack.c.b16 %v1365, %v1364
      %v1441 = vpack.c.b16 %v1367, %v1366
      %v1442 = vpack.c.b16 %v1369, %v1368
      %v1443 = vpack.c.b16 %v1371, %v1370
      %v1444 = vpack.c.b16 %v1373, %v1372
      %v1445 = vpack.c.b16 %v1375, %v1374
      %v1446 = vpack.c.b16 %v1377, %v1376
      %v1447 = vpack.c.b16 %v1379, %v1378
      %v1448 = vpack.c.b16 %v1381, %v1380
      %v1449 = vpack.c.b16 %v1383, %v1382
      %v1450 = vpack.c.b16 %v1385, %v1384
      %v1451 = vpack.c.b16 %v1387, %v1386
      %vm1452 = vcmask 261120
      %v1454 = vsel %vm1452, %v1388, 0
      %v1457 = vsel %vm1452, %v1389, 0
      %v1460 = vsel %vm1452, %v1390, 0
      %v1463 = vsel %vm1452, %v1391, 0
      %v1466 = vsel %vm1452, %v1392, 0
      %v1469 = vsel %vm1452, %v1393, 0
      %v1472 = vsel %vm1452, %v1394, 0
      %v1475 = vsel %vm1452, %v1395, 0
      %v1478 = vsel %vm1452, %v1396, 0
      %v1481 = vsel %vm1452, %v1397, 0
      %v1484 = vsel %vm1452, %v1398, 0
      %v1487 = vsel %vm1452, %v1399, 0
      %v1490 = vsel %vm1452, %v1400, 0
      %v1493 = vsel %vm1452, %v1401, 0
      %v1496 = vsel %vm1452, %v1402, 0
      %v1499 = vsel %vm1452, %v1403, 0
      %v1502 = vsel %vm1452, %v1404, 0
      %v1505 = vsel %vm1452, %v1405, 0
      %v1508 = vsel %vm1452, %v1406, 0
      %v1511 = vsel %vm1452, %v1407, 0
      %v1514 = vsel %vm1452, %v1408, 0
      %v1517 = vsel %vm1452, %v1409, 0
      %v1520 = vsel %vm1452, %v1410, 0
      %v1523 = vsel %vm1452, %v1411, 0
      %v1526 = vsel %vm1452, %v1412, 0
      %v1529 = vsel %vm1452, %v1413, 0
      %v1532 = vsel %vm1452, %v1414, 0
      %v1535 = vsel %vm1452, %v1415, 0
      %v1538 = vsel %vm1452, %v1416, 0
      %v1541 = vsel %vm1452, %v1417, 0
      %v1544 = vsel %vm1452, %v1418, 0
      %v1547 = vsel %vm1452, %v1419, 0
      %v1550 = vsel %vm1452, %v1420, 0
      %v1553 = vsel %vm1452, %v1421, 0
      %v1556 = vsel %vm1452, %v1422, 0
      %v1559 = vsel %vm1452, %v1423, 0
      %v1562 = vsel %vm1452, %v1424, 0
      %v1565 = vsel %vm1452, %v1425, 0
      %v1568 = vsel %vm1452, %v1426, 0
      %v1571 = vsel %vm1452, %v1427, 0
      %v1574 = vsel %vm1452, %v1428, 0
      %v1577 = vsel %vm1452, %v1429, 0
      %v1580 = vsel %vm1452, %v1430, 0
      %v1583 = vsel %vm1452, %v1431, 0
      %v1586 = vsel %vm1452, %v1432, 0
      %v1589 = vsel %vm1452, %v1433, 0
      %v1592 = vsel %vm1452, %v1434, 0
      %v1595 = vsel %vm1452, %v1435, 0
      %v1598 = vsel %vm1452, %v1436, 0
      %v1601 = vsel %vm1452, %v1437, 0
      %v1604 = vsel %vm1452, %v1438, 0
      %v1607 = vsel %vm1452, %v1439, 0
      %v1610 = vsel %vm1452, %v1440, 0
      %v1613 = vsel %vm1452, %v1441, 0
      %v1616 = vsel %vm1452, %v1442, 0
      %v1619 = vsel %vm1452, %v1443, 0
      %v1622 = vsel %vm1452, %v1444, 0
      %v1625 = vsel %vm1452, %v1445, 0
      %v1628 = vsel %vm1452, %v1446, 0
      %v1631 = vsel %vm1452, %v1447, 0
      %v1634 = vsel %vm1452, %v1448, 0
      %v1637 = vsel %vm1452, %v1449, 0
      %v1640 = vsel %vm1452, %v1450, 0
      %v1643 = vsel %vm1452, %v1451, 0
      %1645 = vmatprep.subr.bf16.mxu0 0
      %1646 = vmatpush1.bf16.msra.mxu0 %v234
      %1647 = vmatprep.subr.bf16.mxu0 0
      %1648 = vmatpush1.bf16.msra.mxu0 %v235
      %1649 = vmatprep.subr.bf16.mxu0 0
      %1650 = vmatpush1.bf16.msra.mxu0 0
      %1651 = vmatprep.subr.bf16.mxu0 0
      %1652 = vmatpush1.bf16.msra.mxu0 0
      %1653 = vmatprep.subr.bf16.mxu0 0
      %1654 = vmatpush1.bf16.msra.mxu0 0
      %1655 = vmatprep.subr.bf16.mxu0 0
      %1656 = vmatpush1.bf16.msra.mxu0 0
      %1657 = vmatprep.subr.bf16.mxu0 0
      %1658 = vmatpush1.bf16.msra.mxu0 0
      %1659 = vmatprep.subr.bf16.mxu0 0
      %1660 = vmatpush1.bf16.msra.mxu0 0
      %1661 = vmatprep.subr.bf16.mxu0 0
      %1662 = vmatpush1.bf16.msra.mxu0 0
      %1663 = vmatprep.subr.bf16.mxu0 0
      %1664 = vmatpush1.bf16.msra.mxu0 0
      %1665 = vmatprep.subr.bf16.mxu0 0
      %1666 = vmatpush1.bf16.msra.mxu0 0
      %1667 = vmatprep.subr.bf16.mxu0 0
      %1668 = vmatpush1.bf16.msra.mxu0 0
      %1669 = vmatprep.subr.bf16.mxu0 0
      %1670 = vmatpush1.bf16.msra.mxu0 0
      %1671 = vmatprep.subr.bf16.mxu0 0
      %1672 = vmatpush1.bf16.msra.mxu0 0
      %1673 = vmatprep.subr.bf16.mxu0 0
      %1674 = vmatpush1.bf16.msra.mxu0 0
      %1675 = vmatprep.subr.bf16.mxu0 0
      %1676 = vmatpush1.bf16.msra.mxu0 0
      %1677 = vmatprep.mubr.bf16.mxu0 0
      %1678 = vmatmul.mubr.bf16.gmra.mrb[0].mxu0 %v1454
      %v1679 = vpop.f32.mrb[0].mxu0
      %v1680 = vadd.f32 %v495, %v1679
      %v1681 = vpop.f32.mrb[0].mxu0
      %v1682 = vpop.f32.mrb[0].mxu0
      %v1683 = vadd.f32 %v500, %v1682
      %v1684 = vpop.f32.mrb[0].mxu0
      %1685 = vmatprep.mubr.bf16.mxu0 0
      %1686 = vmatmul.mubr.bf16.gmra.mrb[0].mxu0 %v1457
      %v1687 = vpop.f32.mrb[0].mxu0
      %v1688 = vadd.f32 %v505, %v1687
      %v1689 = vpop.f32.mrb[0].mxu0
      %v1690 = vpop.f32.mrb[0].mxu0
      %v1691 = vadd.f32 %v510, %v1690
      %v1692 = vpop.f32.mrb[0].mxu0
      %1693 = vmatprep.mubr.bf16.mxu0 0
      %1694 = vmatmul.mubr.bf16.gmra.mrb[0].mxu0 %v1460
      %v1695 = vpop.f32.mrb[0].mxu0
      %v1696 = vadd.f32 %v515, %v1695
      %v1697 = vpop.f32.mrb[0].mxu0
      %v1698 = vpop.f32.mrb[0].mxu0
      %v1699 = vadd.f32 %v520, %v1698
      %v1700 = vpop.f32.mrb[0].mxu0
      %1701 = vmatprep.mubr.bf16.mxu0 0
      %1702 = vmatmul.mubr.bf16.gmra.mrb[0].mxu0 %v1463
      %v1703 = vpop.f32.mrb[0].mxu0
      %v1704 = vadd.f32 %v525, %v1703
      %v1705 = vpop.f32.mrb[0].mxu0
      %v1706 = vpop.f32.mrb[0].mxu0
      %v1707 = vadd.f32 %v530, %v1706
      %v1708 = vpop.f32.mrb[0].mxu0
      %1709 = vmatprep.mubr.bf16.mxu0 0
      %1710 = vmatmul.mubr.bf16.gmra.mrb[0].mxu0 %v1466
      %v1711 = vpop.f32.mrb[0].mxu0
      %v1712 = vadd.f32 %v535, %v1711
      %v1713 = vpop.f32.mrb[0].mxu0
      %v1714 = vpop.f32.mrb[0].mxu0
      %v1715 = vadd.f32 %v540, %v1714
      %v1716 = vpop.f32.mrb[0].mxu0
      %1717 = vmatprep.mubr.bf16.mxu0 0
      %1718 = vmatmul.mubr.bf16.gmra.mrb[0].mxu0 %v1469
      %v1719 = vpop.f32.mrb[0].mxu0
      %v1720 = vadd.f32 %v545, %v1719
      %v1721 = vpop.f32.mrb[0].mxu0
      %v1722 = vpop.f32.mrb[0].mxu0
      %v1723 = vadd.f32 %v550, %v1722
      %v1724 = vpop.f32.mrb[0].mxu0
      %1725 = vmatprep.mubr.bf16.mxu0 0
      %1726 = vmatmul.mubr.bf16.gmra.mrb[0].mxu0 %v1472
      %v1727 = vpop.f32.mrb[0].mxu0
      %v1728 = vadd.f32 %v555, %v1727
      %v1729 = vpop.f32.mrb[0].mxu0
      %v1730 = vpop.f32.mrb[0].mxu0
      %v1731 = vadd.f32 %v560, %v1730
      %v1732 = vpop.f32.mrb[0].mxu0
      %1733 = vmatprep.mubr.bf16.mxu0 0
      %1734 = vmatmul.mubr.bf16.gmra.mrb[0].mxu0 %v1475
      %v1735 = vpop.f32.mrb[0].mxu0
      %v1736 = vadd.f32 %v565, %v1735
      %v1737 = vpop.f32.mrb[0].mxu0
      %v1738 = vpop.f32.mrb[0].mxu0
      %v1739 = vadd.f32 %v570, %v1738
      %v1740 = vpop.f32.mrb[0].mxu0
      %1741 = vmatprep.mubr.bf16.mxu0 0
      %1742 = vmatmul.mubr.bf16.gmra.mrb[0].mxu0 %v1478
      %v1743 = vpop.f32.mrb[0].mxu0
      %v1744 = vadd.f32 %v575, %v1743
      %v1745 = vpop.f32.mrb[0].mxu0
      %v1746 = vpop.f32.mrb[0].mxu0
      %v1747 = vadd.f32 %v580, %v1746
      %v1748 = vpop.f32.mrb[0].mxu0
      %1749 = vmatprep.mubr.bf16.mxu0 0
      %1750 = vmatmul.mubr.bf16.gmra.mrb[0].mxu0 %v1481
      %v1751 = vpop.f32.mrb[0].mxu0
      %v1752 = vadd.f32 %v585, %v1751
      %v1753 = vpop.f32.mrb[0].mxu0
      %v1754 = vpop.f32.mrb[0].mxu0
      %v1755 = vadd.f32 %v590, %v1754
      %v1756 = vpop.f32.mrb[0].mxu0
      %1757 = vmatprep.mubr.bf16.mxu0 0
      %1758 = vmatmul.mubr.bf16.gmra.mrb[0].mxu0 %v1484
      %v1759 = vpop.f32.mrb[0].mxu0
      %v1760 = vadd.f32 %v595, %v1759
      %v1761 = vpop.f32.mrb[0].mxu0
      %v1762 = vpop.f32.mrb[0].mxu0
      %v1763 = vadd.f32 %v600, %v1762
      %v1764 = vpop.f32.mrb[0].mxu0
      %1765 = vmatprep.mubr.bf16.mxu0 0
      %1766 = vmatmul.mubr.bf16.gmra.mrb[0].mxu0 %v1487
      %v1767 = vpop.f32.mrb[0].mxu0
      %v1768 = vadd.f32 %v605, %v1767
      %v1769 = vpop.f32.mrb[0].mxu0
      %v1770 = vpop.f32.mrb[0].mxu0
      %v1771 = vadd.f32 %v610, %v1770
      %v1772 = vpop.f32.mrb[0].mxu0
      %1773 = vmatprep.mubr.bf16.mxu0 0
      %1774 = vmatmul.mubr.bf16.gmra.mrb[0].mxu0 %v1490
      %v1775 = vpop.f32.mrb[0].mxu0
      %v1776 = vadd.f32 %v615, %v1775
      %v1777 = vpop.f32.mrb[0].mxu0
      %v1778 = vpop.f32.mrb[0].mxu0
      %v1779 = vadd.f32 %v620, %v1778
      %v1780 = vpop.f32.mrb[0].mxu0
      %1781 = vmatprep.mubr.bf16.mxu0 0
      %1782 = vmatmul.mubr.bf16.gmra.mrb[0].mxu0 %v1493
      %v1783 = vpop.f32.mrb[0].mxu0
      %v1784 = vadd.f32 %v625, %v1783
      %v1785 = vpop.f32.mrb[0].mxu0
      %v1786 = vpop.f32.mrb[0].mxu0
      %v1787 = vadd.f32 %v630, %v1786
      %v1788 = vpop.f32.mrb[0].mxu0
      %1789 = vmatprep.mubr.bf16.mxu0 0
      %1790 = vmatmul.mubr.bf16.gmra.mrb[0].mxu0 %v1496
      %v1791 = vpop.f32.mrb[0].mxu0
      %v1792 = vadd.f32 %v635, %v1791
      %v1793 = vpop.f32.mrb[0].mxu0
      %v1794 = vpop.f32.mrb[0].mxu0
      %v1795 = vadd.f32 %v640, %v1794
      %v1796 = vpop.f32.mrb[0].mxu0
      %1797 = vmatprep.mubr.bf16.mxu0 0
      %1798 = vmatmul.mubr.bf16.gmra.mrb[0].mxu0 %v1499
      %v1799 = vpop.f32.mrb[0].mxu0
      %v1800 = vadd.f32 %v645, %v1799
      %v1801 = vpop.f32.mrb[0].mxu0
      %v1802 = vpop.f32.mrb[0].mxu0
      %v1803 = vadd.f32 %v650, %v1802
      %v1804 = vpop.f32.mrb[0].mxu0
      %1805 = vmatprep.mubr.bf16.mxu0 0
      %1806 = vmatmul.mubr.bf16.gmra.mrb[0].mxu0 %v1502
      %v1807 = vpop.f32.mrb[0].mxu0
      %v1808 = vadd.f32 %v655, %v1807
      %v1809 = vpop.f32.mrb[0].mxu0
      %v1810 = vpop.f32.mrb[0].mxu0
      %v1811 = vadd.f32 %v660, %v1810
      %v1812 = vpop.f32.mrb[0].mxu0
      %1813 = vmatprep.mubr.bf16.mxu0 0
      %1814 = vmatmul.mubr.bf16.gmra.mrb[0].mxu0 %v1505
      %v1815 = vpop.f32.mrb[0].mxu0
      %v1816 = vadd.f32 %v665, %v1815
      %v1817 = vpop.f32.mrb[0].mxu0
      %v1818 = vpop.f32.mrb[0].mxu0
      %v1819 = vadd.f32 %v670, %v1818
      %v1820 = vpop.f32.mrb[0].mxu0
      %1821 = vmatprep.mubr.bf16.mxu0 0
      %1822 = vmatmul.mubr.bf16.gmra.mrb[0].mxu0 %v1508
      %v1823 = vpop.f32.mrb[0].mxu0
      %v1824 = vadd.f32 %v675, %v1823
      %v1825 = vpop.f32.mrb[0].mxu0
      %v1826 = vpop.f32.mrb[0].mxu0
      %v1827 = vadd.f32 %v680, %v1826
      %v1828 = vpop.f32.mrb[0].mxu0
      %1829 = vmatprep.mubr.bf16.mxu0 0
      %1830 = vmatmul.mubr.bf16.gmra.mrb[0].mxu0 %v1511
      %v1831 = vpop.f32.mrb[0].mxu0
      %v1832 = vadd.f32 %v685, %v1831
      %v1833 = vpop.f32.mrb[0].mxu0
      %v1834 = vpop.f32.mrb[0].mxu0
      %v1835 = vadd.f32 %v690, %v1834
      %v1836 = vpop.f32.mrb[0].mxu0
      %1837 = vmatprep.mubr.bf16.mxu0 0
      %1838 = vmatmul.mubr.bf16.gmra.mrb[0].mxu0 %v1514
      %v1839 = vpop.f32.mrb[0].mxu0
      %v1840 = vadd.f32 %v695, %v1839
      %v1841 = vpop.f32.mrb[0].mxu0
      %v1842 = vpop.f32.mrb[0].mxu0
      %v1843 = vadd.f32 %v700, %v1842
      %v1844 = vpop.f32.mrb[0].mxu0
      %1845 = vmatprep.mubr.bf16.mxu0 0
      %1846 = vmatmul.mubr.bf16.gmra.mrb[0].mxu0 %v1517
      %v1847 = vpop.f32.mrb[0].mxu0
      %v1848 = vadd.f32 %v705, %v1847
      %v1849 = vpop.f32.mrb[0].mxu0
      %v1850 = vpop.f32.mrb[0].mxu0
      %v1851 = vadd.f32 %v710, %v1850
      %v1852 = vpop.f32.mrb[0].mxu0
      %1853 = vmatprep.mubr.bf16.mxu0 0
      %1854 = vmatmul.mubr.bf16.gmra.mrb[0].mxu0 %v1520
      %v1855 = vpop.f32.mrb[0].mxu0
      %v1856 = vadd.f32 %v715, %v1855
      %v1857 = vpop.f32.mrb[0].mxu0
      %v1858 = vpop.f32.mrb[0].mxu0
      %v1859 = vadd.f32 %v720, %v1858
      %v1860 = vpop.f32.mrb[0].mxu0
      %1861 = vmatprep.mubr.bf16.mxu0 0
      %1862 = vmatmul.mubr.bf16.gmra.mrb[0].mxu0 %v1523
      %v1863 = vpop.f32.mrb[0].mxu0
      %v1864 = vadd.f32 %v725, %v1863
      %v1865 = vpop.f32.mrb[0].mxu0
      %v1866 = vpop.f32.mrb[0].mxu0
      %v1867 = vadd.f32 %v730, %v1866
      %v1868 = vpop.f32.mrb[0].mxu0
      %1869 = vmatprep.mubr.bf16.mxu0 0
      %1870 = vmatmul.mubr.bf16.gmra.mrb[0].mxu0 %v1526
      %v1871 = vpop.f32.mrb[0].mxu0
      %v1872 = vadd.f32 %v735, %v1871
      %v1873 = vpop.f32.mrb[0].mxu0
      %v1874 = vpop.f32.mrb[0].mxu0
      %v1875 = vadd.f32 %v740, %v1874
      %v1876 = vpop.f32.mrb[0].mxu0
      %1877 = vmatprep.mubr.bf16.mxu0 0
      %1878 = vmatmul.mubr.bf16.gmra.mrb[0].mxu0 %v1529
      %v1879 = vpop.f32.mrb[0].mxu0
      %v1880 = vadd.f32 %v745, %v1879
      %v1881 = vpop.f32.mrb[0].mxu0
      %v1882 = vpop.f32.mrb[0].mxu0
      %v1883 = vadd.f32 %v750, %v1882
      %v1884 = vpop.f32.mrb[0].mxu0
      %1885 = vmatprep.mubr.bf16.mxu0 0
      %1886 = vmatmul.mubr.bf16.gmra.mrb[0].mxu0 %v1532
      %v1887 = vpop.f32.mrb[0].mxu0
      %v1888 = vadd.f32 %v755, %v1887
      %v1889 = vpop.f32.mrb[0].mxu0
      %v1890 = vpop.f32.mrb[0].mxu0
      %v1891 = vadd.f32 %v760, %v1890
      %v1892 = vpop.f32.mrb[0].mxu0
      %1893 = vmatprep.mubr.bf16.mxu0 0
      %1894 = vmatmul.mubr.bf16.gmra.mrb[0].mxu0 %v1535
      %v1895 = vpop.f32.mrb[0].mxu0
      %v1896 = vadd.f32 %v765, %v1895
      %v1897 = vpop.f32.mrb[0].mxu0
      %v1898 = vpop.f32.mrb[0].mxu0
      %v1899 = vadd.f32 %v770, %v1898
      %v1900 = vpop.f32.mrb[0].mxu0
      %1901 = vmatprep.mubr.bf16.mxu0 0
      %1902 = vmatmul.mubr.bf16.gmra.mrb[0].mxu0 %v1538
      %v1903 = vpop.f32.mrb[0].mxu0
      %v1904 = vadd.f32 %v775, %v1903
      %v1905 = vpop.f32.mrb[0].mxu0
      %v1906 = vpop.f32.mrb[0].mxu0
      %v1907 = vadd.f32 %v780, %v1906
      %v1908 = vpop.f32.mrb[0].mxu0
      %1909 = vmatprep.mubr.bf16.mxu0 0
      %1910 = vmatmul.mubr.bf16.gmra.mrb[0].mxu0 %v1541
      %v1911 = vpop.f32.mrb[0].mxu0
      %v1912 = vadd.f32 %v785, %v1911
      %v1913 = vpop.f32.mrb[0].mxu0
      %v1914 = vpop.f32.mrb[0].mxu0
      %v1915 = vadd.f32 %v790, %v1914
      %v1916 = vpop.f32.mrb[0].mxu0
      %1917 = vmatprep.mubr.bf16.mxu0 0
      %1918 = vmatmul.mubr.bf16.gmra.mrb[0].mxu0 %v1544
      %v1919 = vpop.f32.mrb[0].mxu0
      %v1920 = vadd.f32 %v795, %v1919
      %v1921 = vpop.f32.mrb[0].mxu0
      %v1922 = vpop.f32.mrb[0].mxu0
      %v1923 = vadd.f32 %v800, %v1922
      %v1924 = vpop.f32.mrb[0].mxu0
      %1925 = vmatprep.mubr.bf16.mxu0 0
      %1926 = vmatmul.mubr.bf16.gmra.mrb[0].mxu0 %v1547
      %v1927 = vpop.f32.mrb[0].mxu0
      %v1928 = vadd.f32 %v805, %v1927
      %v1929 = vpop.f32.mrb[0].mxu0
      %v1930 = vpop.f32.mrb[0].mxu0
      %v1931 = vadd.f32 %v810, %v1930
      %v1932 = vpop.f32.mrb[0].mxu0
      %1933 = vmatprep.mubr.bf16.mxu0 0
      %1934 = vmatmul.mubr.bf16.gmra.mrb[0].mxu0 %v1550
      %v1935 = vpop.f32.mrb[0].mxu0
      %v1936 = vadd.f32 %v815, %v1935
      %v1937 = vpop.f32.mrb[0].mxu0
      %v1938 = vpop.f32.mrb[0].mxu0
      %v1939 = vadd.f32 %v820, %v1938
      %v1940 = vpop.f32.mrb[0].mxu0
      %1941 = vmatprep.mubr.bf16.mxu0 0
      %1942 = vmatmul.mubr.bf16.gmra.mrb[0].mxu0 %v1553
      %v1943 = vpop.f32.mrb[0].mxu0
      %v1944 = vadd.f32 %v825, %v1943
      %v1945 = vpop.f32.mrb[0].mxu0
      %v1946 = vpop.f32.mrb[0].mxu0
      %v1947 = vadd.f32 %v830, %v1946
      %v1948 = vpop.f32.mrb[0].mxu0
      %1949 = vmatprep.mubr.bf16.mxu0 0
      %1950 = vmatmul.mubr.bf16.gmra.mrb[0].mxu0 %v1556
      %v1951 = vpop.f32.mrb[0].mxu0
      %v1952 = vadd.f32 %v835, %v1951
      %v1953 = vpop.f32.mrb[0].mxu0
      %v1954 = vpop.f32.mrb[0].mxu0
      %v1955 = vadd.f32 %v840, %v1954
      %v1956 = vpop.f32.mrb[0].mxu0
      %1957 = vmatprep.mubr.bf16.mxu0 0
      %1958 = vmatmul.mubr.bf16.gmra.mrb[0].mxu0 %v1559
      %v1959 = vpop.f32.mrb[0].mxu0
      %v1960 = vadd.f32 %v845, %v1959
      %v1961 = vpop.f32.mrb[0].mxu0
      %v1962 = vpop.f32.mrb[0].mxu0
      %v1963 = vadd.f32 %v850, %v1962
      %v1964 = vpop.f32.mrb[0].mxu0
      %1965 = vmatprep.mubr.bf16.mxu0 0
      %1966 = vmatmul.mubr.bf16.gmra.mrb[0].mxu0 %v1562
      %v1967 = vpop.f32.mrb[0].mxu0
      %v1968 = vadd.f32 %v855, %v1967
      %v1969 = vpop.f32.mrb[0].mxu0
      %v1970 = vpop.f32.mrb[0].mxu0
      %v1971 = vadd.f32 %v860, %v1970
      %v1972 = vpop.f32.mrb[0].mxu0
      %1973 = vmatprep.mubr.bf16.mxu0 0
      %1974 = vmatmul.mubr.bf16.gmra.mrb[0].mxu0 %v1565
      %v1975 = vpop.f32.mrb[0].mxu0
      %v1976 = vadd.f32 %v865, %v1975
      %v1977 = vpop.f32.mrb[0].mxu0
      %v1978 = vpop.f32.mrb[0].mxu0
      %v1979 = vadd.f32 %v870, %v1978
      %v1980 = vpop.f32.mrb[0].mxu0
      %1981 = vmatprep.mubr.bf16.mxu0 0
      %1982 = vmatmul.mubr.bf16.gmra.mrb[0].mxu0 %v1568
      %v1983 = vpop.f32.mrb[0].mxu0
      %v1984 = vadd.f32 %v875, %v1983
      %v1985 = vpop.f32.mrb[0].mxu0
      %v1986 = vpop.f32.mrb[0].mxu0
      %v1987 = vadd.f32 %v880, %v1986
      %v1988 = vpop.f32.mrb[0].mxu0
      %1989 = vmatprep.mubr.bf16.mxu0 0
      %1990 = vmatmul.mubr.bf16.gmra.mrb[0].mxu0 %v1571
      %v1991 = vpop.f32.mrb[0].mxu0
      %v1992 = vadd.f32 %v885, %v1991
      %v1993 = vpop.f32.mrb[0].mxu0
      %v1994 = vpop.f32.mrb[0].mxu0
      %v1995 = vadd.f32 %v890, %v1994
      %v1996 = vpop.f32.mrb[0].mxu0
      %1997 = vmatprep.mubr.bf16.mxu0 0
      %1998 = vmatmul.mubr.bf16.gmra.mrb[0].mxu0 %v1574
      %v1999 = vpop.f32.mrb[0].mxu0
      %v2000 = vadd.f32 %v895, %v1999
      %v2001 = vpop.f32.mrb[0].mxu0
      %v2002 = vpop.f32.mrb[0].mxu0
      %v2003 = vadd.f32 %v900, %v2002
      %v2004 = vpop.f32.mrb[0].mxu0
      %2005 = vmatprep.mubr.bf16.mxu0 0
      %2006 = vmatmul.mubr.bf16.gmra.mrb[0].mxu0 %v1577
      %v2007 = vpop.f32.mrb[0].mxu0
      %v2008 = vadd.f32 %v905, %v2007
      %v2009 = vpop.f32.mrb[0].mxu0
      %v2010 = vpop.f32.mrb[0].mxu0
      %v2011 = vadd.f32 %v910, %v2010
      %v2012 = vpop.f32.mrb[0].mxu0
      %2013 = vmatprep.mubr.bf16.mxu0 0
      %2014 = vmatmul.mubr.bf16.gmra.mrb[0].mxu0 %v1580
      %v2015 = vpop.f32.mrb[0].mxu0
      %v2016 = vadd.f32 %v915, %v2015
      %v2017 = vpop.f32.mrb[0].mxu0
      %v2018 = vpop.f32.mrb[0].mxu0
      %v2019 = vadd.f32 %v920, %v2018
      %v2020 = vpop.f32.mrb[0].mxu0
      %2021 = vmatprep.mubr.bf16.mxu0 0
      %2022 = vmatmul.mubr.bf16.gmra.mrb[0].mxu0 %v1583
      %v2023 = vpop.f32.mrb[0].mxu0
      %v2024 = vadd.f32 %v925, %v2023
      %v2025 = vpop.f32.mrb[0].mxu0
      %v2026 = vpop.f32.mrb[0].mxu0
      %v2027 = vadd.f32 %v930, %v2026
      %v2028 = vpop.f32.mrb[0].mxu0
      %2029 = vmatprep.mubr.bf16.mxu0 0
      %2030 = vmatmul.mubr.bf16.gmra.mrb[0].mxu0 %v1586
      %v2031 = vpop.f32.mrb[0].mxu0
      %v2032 = vadd.f32 %v935, %v2031
      %v2033 = vpop.f32.mrb[0].mxu0
      %v2034 = vpop.f32.mrb[0].mxu0
      %v2035 = vadd.f32 %v940, %v2034
      %v2036 = vpop.f32.mrb[0].mxu0
      %2037 = vmatprep.mubr.bf16.mxu0 0
      %2038 = vmatmul.mubr.bf16.gmra.mrb[0].mxu0 %v1589
      %v2039 = vpop.f32.mrb[0].mxu0
      %v2040 = vadd.f32 %v945, %v2039
      %v2041 = vpop.f32.mrb[0].mxu0
      %v2042 = vpop.f32.mrb[0].mxu0
      %v2043 = vadd.f32 %v950, %v2042
      %v2044 = vpop.f32.mrb[0].mxu0
      %2045 = vmatprep.mubr.bf16.mxu0 0
      %2046 = vmatmul.mubr.bf16.gmra.mrb[0].mxu0 %v1592
      %v2047 = vpop.f32.mrb[0].mxu0
      %v2048 = vadd.f32 %v955, %v2047
      %v2049 = vpop.f32.mrb[0].mxu0
      %v2050 = vpop.f32.mrb[0].mxu0
      %v2051 = vadd.f32 %v960, %v2050
      %v2052 = vpop.f32.mrb[0].mxu0
      %2053 = vmatprep.mubr.bf16.mxu0 0
      %2054 = vmatmul.mubr.bf16.gmra.mrb[0].mxu0 %v1595
      %v2055 = vpop.f32.mrb[0].mxu0
      %v2056 = vadd.f32 %v965, %v2055
      %v2057 = vpop.f32.mrb[0].mxu0
      %v2058 = vpop.f32.mrb[0].mxu0
      %v2059 = vadd.f32 %v970, %v2058
      %v2060 = vpop.f32.mrb[0].mxu0
      %2061 = vmatprep.mubr.bf16.mxu0 0
      %2062 = vmatmul.mubr.bf16.gmra.mrb[0].mxu0 %v1598
      %v2063 = vpop.f32.mrb[0].mxu0
      %v2064 = vadd.f32 %v975, %v2063
      %v2065 = vpop.f32.mrb[0].mxu0
      %v2066 = vpop.f32.mrb[0].mxu0
      %v2067 = vadd.f32 %v980, %v2066
      %v2068 = vpop.f32.mrb[0].mxu0
      %2069 = vmatprep.mubr.bf16.mxu0 0
      %2070 = vmatmul.mubr.bf16.gmra.mrb[0].mxu0 %v1601
      %v2071 = vpop.f32.mrb[0].mxu0
      %v2072 = vadd.f32 %v985, %v2071
      %v2073 = vpop.f32.mrb[0].mxu0
      %v2074 = vpop.f32.mrb[0].mxu0
      %v2075 = vadd.f32 %v990, %v2074
      %v2076 = vpop.f32.mrb[0].mxu0
      %2077 = vmatprep.mubr.bf16.mxu0 0
      %2078 = vmatmul.mubr.bf16.gmra.mrb[0].mxu0 %v1604
      %v2079 = vpop.f32.mrb[0].mxu0
      %v2080 = vadd.f32 %v995, %v2079
      %v2081 = vpop.f32.mrb[0].mxu0
      %v2082 = vpop.f32.mrb[0].mxu0
      %v2083 = vadd.f32 %v1000, %v2082
      %v2084 = vpop.f32.mrb[0].mxu0
      %2085 = vmatprep.mubr.bf16.mxu0 0
      %2086 = vmatmul.mubr.bf16.gmra.mrb[0].mxu0 %v1607
      %v2087 = vpop.f32.mrb[0].mxu0
      %v2088 = vadd.f32 %v1005, %v2087
      %v2089 = vpop.f32.mrb[0].mxu0
      %v2090 = vpop.f32.mrb[0].mxu0
      %v2091 = vadd.f32 %v1010, %v2090
      %v2092 = vpop.f32.mrb[0].mxu0
      %2093 = vmatprep.mubr.bf16.mxu0 0
      %2094 = vmatmul.mubr.bf16.gmra.mrb[0].mxu0 %v1610
      %v2095 = vpop.f32.mrb[0].mxu0
      %v2096 = vadd.f32 %v1015, %v2095
      %v2097 = vpop.f32.mrb[0].mxu0
      %v2098 = vpop.f32.mrb[0].mxu0
      %v2099 = vadd.f32 %v1020, %v2098
      %v2100 = vpop.f32.mrb[0].mxu0
      %2101 = vmatprep.mubr.bf16.mxu0 0
      %2102 = vmatmul.mubr.bf16.gmra.mrb[0].mxu0 %v1613
      %v2103 = vpop.f32.mrb[0].mxu0
      %v2104 = vadd.f32 %v1025, %v2103
      %v2105 = vpop.f32.mrb[0].mxu0
      %v2106 = vpop.f32.mrb[0].mxu0
      %v2107 = vadd.f32 %v1030, %v2106
      %v2108 = vpop.f32.mrb[0].mxu0
      %2109 = vmatprep.mubr.bf16.mxu0 0
      %2110 = vmatmul.mubr.bf16.gmra.mrb[0].mxu0 %v1616
      %v2111 = vpop.f32.mrb[0].mxu0
      %v2112 = vadd.f32 %v1035, %v2111
      %v2113 = vpop.f32.mrb[0].mxu0
      %v2114 = vpop.f32.mrb[0].mxu0
      %v2115 = vadd.f32 %v1040, %v2114
      %v2116 = vpop.f32.mrb[0].mxu0
      %2117 = vmatprep.mubr.bf16.mxu0 0
      %2118 = vmatmul.mubr.bf16.gmra.mrb[0].mxu0 %v1619
      %v2119 = vpop.f32.mrb[0].mxu0
      %v2120 = vadd.f32 %v1045, %v2119
      %v2121 = vpop.f32.mrb[0].mxu0
      %v2122 = vpop.f32.mrb[0].mxu0
      %v2123 = vadd.f32 %v1050, %v2122
      %v2124 = vpop.f32.mrb[0].mxu0
      %2125 = vmatprep.mubr.bf16.mxu0 0
      %2126 = vmatmul.mubr.bf16.gmra.mrb[0].mxu0 %v1622
      %v2127 = vpop.f32.mrb[0].mxu0
      %v2128 = vadd.f32 %v1055, %v2127
      %v2129 = vpop.f32.mrb[0].mxu0
      %v2130 = vpop.f32.mrb[0].mxu0
      %v2131 = vadd.f32 %v1060, %v2130
      %v2132 = vpop.f32.mrb[0].mxu0
      %2133 = vmatprep.mubr.bf16.mxu0 0
      %2134 = vmatmul.mubr.bf16.gmra.mrb[0].mxu0 %v1625
      %v2135 = vpop.f32.mrb[0].mxu0
      %v2136 = vadd.f32 %v1065, %v2135
      %v2137 = vpop.f32.mrb[0].mxu0
      %v2138 = vpop.f32.mrb[0].mxu0
      %v2139 = vadd.f32 %v1070, %v2138
      %v2140 = vpop.f32.mrb[0].mxu0
      %2141 = vmatprep.mubr.bf16.mxu0 0
      %2142 = vmatmul.mubr.bf16.gmra.mrb[0].mxu0 %v1628
      %v2143 = vpop.f32.mrb[0].mxu0
      %v2144 = vadd.f32 %v1075, %v2143
      %v2145 = vpop.f32.mrb[0].mxu0
      %v2146 = vpop.f32.mrb[0].mxu0
      %v2147 = vadd.f32 %v1080, %v2146
      %v2148 = vpop.f32.mrb[0].mxu0
      %2149 = vmatprep.mubr.bf16.mxu0 0
      %2150 = vmatmul.mubr.bf16.gmra.mrb[0].mxu0 %v1631
      %v2151 = vpop.f32.mrb[0].mxu0
      %v2152 = vadd.f32 %v1085, %v2151
      %v2153 = vpop.f32.mrb[0].mxu0
      %v2154 = vpop.f32.mrb[0].mxu0
      %v2155 = vadd.f32 %v1090, %v2154
      %v2156 = vpop.f32.mrb[0].mxu0
      %2157 = vmatprep.mubr.bf16.mxu0 0
      %2158 = vmatmul.mubr.bf16.gmra.mrb[0].mxu0 %v1634
      %v2159 = vpop.f32.mrb[0].mxu0
      %v2160 = vadd.f32 %v1095, %v2159
      %v2161 = vpop.f32.mrb[0].mxu0
      %v2162 = vpop.f32.mrb[0].mxu0
      %v2163 = vadd.f32 %v1100, %v2162
      %v2164 = vpop.f32.mrb[0].mxu0
      %2165 = vmatprep.mubr.bf16.mxu0 0
      %2166 = vmatmul.mubr.bf16.gmra.mrb[0].mxu0 %v1637
      %v2167 = vpop.f32.mrb[0].mxu0
      %v2168 = vadd.f32 %v1105, %v2167
      %v2169 = vpop.f32.mrb[0].mxu0
      %v2170 = vpop.f32.mrb[0].mxu0
      %v2171 = vadd.f32 %v1110, %v2170
      %v2172 = vpop.f32.mrb[0].mxu0
      %2173 = vmatprep.mubr.bf16.mxu0 0
      %2174 = vmatmul.mubr.bf16.gmra.mrb[0].mxu0 %v1640
      %v2175 = vpop.f32.mrb[0].mxu0
      %v2176 = vadd.f32 %v1115, %v2175
      %v2177 = vpop.f32.mrb[0].mxu0
      %v2178 = vpop.f32.mrb[0].mxu0
      %v2179 = vadd.f32 %v1120, %v2178
      %v2180 = vpop.f32.mrb[0].mxu0
      %2181 = vmatprep.mubr.bf16.mxu0 0
      %2182 = vmatmul.mubr.bf16.gmra.mrb[0].mxu0 %v1643
      %v2183 = vpop.f32.mrb[0].mxu0
      %v2184 = vadd.f32 %v1125, %v2183
      %v2185 = vpop.f32.mrb[0].mxu0
      %v2186 = vpop.f32.mrb[0].mxu0
      %v2187 = vadd.f32 %v1130, %v2186
      %v2188 = vpop.f32.mrb[0].mxu0
      %2189 = vdwg.mxu0
      %v2190 = vld [vmem:[%s3] sm:$0xff]
      %v2191 = vld [vmem:[%s3 + $0x8] sm:$0xff]
      %v2192 = vld [vmem:[%s3 + $0x10] sm:$0xff]
      %v2193 = vld [vmem:[%s3 + $0x18] sm:$0xff]
      %v2194 = vld [vmem:[%s3 + $0x20] sm:$0xff]
      %v2195 = vld [vmem:[%s3 + $0x28] sm:$0xff]
      %v2196 = vld [vmem:[%s3 + $0x30] sm:$0xff]
      %v2197 = vld [vmem:[%s3 + $0x38] sm:$0xff]
      %v2198 = vld [vmem:[%s3 + $0x40] sm:$0xff]
      %v2199 = vld [vmem:[%s3 + $0x48] sm:$0xff]
      %v2200 = vld [vmem:[%s3 + $0x50] sm:$0xff]
      %v2201 = vld [vmem:[%s3 + $0x58] sm:$0xff]
      %v2202 = vld [vmem:[%s3 + $0x60] sm:$0xff]
      %v2203 = vld [vmem:[%s3 + $0x68] sm:$0xff]
      %v2204 = vld [vmem:[%s3 + $0x70] sm:$0xff]
      %v2205 = vld [vmem:[%s3 + $0x78] sm:$0xff]
      %v2206 = vld [vmem:[%s3 + $0x80] sm:$0xff]
      %v2207 = vld [vmem:[%s3 + $0x88] sm:$0xff]
      %v2208 = vld [vmem:[%s3 + $0x90] sm:$0xff]
      %v2209 = vld [vmem:[%s3 + $0x98] sm:$0xff]
      %v2210 = vld [vmem:[%s3 + $0xa0] sm:$0xff]
      %v2211 = vld [vmem:[%s3 + $0xa8] sm:$0xff]
      %v2212 = vld [vmem:[%s3 + $0xb0] sm:$0xff]
      %v2213 = vld [vmem:[%s3 + $0xb8] sm:$0xff]
      %v2214 = vld [vmem:[%s3 + $0xc0] sm:$0xff]
      %v2215 = vld [vmem:[%s3 + $0xc8] sm:$0xff]
      %v2216 = vld [vmem:[%s3 + $0xd0] sm:$0xff]
      %v2217 = vld [vmem:[%s3 + $0xd8] sm:$0xff]
      %v2218 = vld [vmem:[%s3 + $0xe0] sm:$0xff]
      %v2219 = vld [vmem:[%s3 + $0xe8] sm:$0xff]
      %v2220 = vld [vmem:[%s3 + $0xf0] sm:$0xff]
      %v2221 = vld [vmem:[%s3 + $0xf8] sm:$0xff]
      %v2222 = vld [vmem:[%s3 + $0x100] sm:$0xff]
      %v2223 = vld [vmem:[%s3 + $0x108] sm:$0xff]
      %v2224 = vld [vmem:[%s3 + $0x110] sm:$0xff]
      %v2225 = vld [vmem:[%s3 + $0x118] sm:$0xff]
      %v2226 = vld [vmem:[%s3 + $0x120] sm:$0xff]
      %v2227 = vld [vmem:[%s3 + $0x128] sm:$0xff]
      %v2228 = vld [vmem:[%s3 + $0x130] sm:$0xff]
      %v2229 = vld [vmem:[%s3 + $0x138] sm:$0xff]
      %v2230 = vld [vmem:[%s3 + $0x140] sm:$0xff]
      %v2231 = vld [vmem:[%s3 + $0x148] sm:$0xff]
      %v2232 = vld [vmem:[%s3 + $0x150] sm:$0xff]
      %v2233 = vld [vmem:[%s3 + $0x158] sm:$0xff]
      %v2234 = vld [vmem:[%s3 + $0x160] sm:$0xff]
      %v2235 = vld [vmem:[%s3 + $0x168] sm:$0xff]
      %v2236 = vld [vmem:[%s3 + $0x170] sm:$0xff]
      %v2237 = vld [vmem:[%s3 + $0x178] sm:$0xff]
      %v2238 = vld [vmem:[%s3 + $0x180] sm:$0xff]
      %v2239 = vld [vmem:[%s3 + $0x188] sm:$0xff]
      %v2240 = vld [vmem:[%s3 + $0x190] sm:$0xff]
      %v2241 = vld [vmem:[%s3 + $0x198] sm:$0xff]
      %v2242 = vld [vmem:[%s3 + $0x1a0] sm:$0xff]
      %v2243 = vld [vmem:[%s3 + $0x1a8] sm:$0xff]
      %v2244 = vld [vmem:[%s3 + $0x1b0] sm:$0xff]
      %v2245 = vld [vmem:[%s3 + $0x1b8] sm:$0xff]
      %v2246 = vld [vmem:[%s3 + $0x1c0] sm:$0xff]
      %v2247 = vld [vmem:[%s3 + $0x1c8] sm:$0xff]
      %v2248 = vld [vmem:[%s3 + $0x1d0] sm:$0xff]
      %v2249 = vld [vmem:[%s3 + $0x1d8] sm:$0xff]
      %v2250 = vld [vmem:[%s3 + $0x1e0] sm:$0xff]
      %v2251 = vld [vmem:[%s3 + $0x1e8] sm:$0xff]
      %v2252 = vld [vmem:[%s3 + $0x1f0] sm:$0xff]
      %v2253 = vld [vmem:[%s3 + $0x1f8] sm:$0xff]
      %v2254 = vld [vmem:[%s3 + $0x200] sm:$0xff]
      %v2255 = vld [vmem:[%s3 + $0x208] sm:$0xff]
      %v2256 = vld [vmem:[%s3 + $0x210] sm:$0xff]
      %v2257 = vld [vmem:[%s3 + $0x218] sm:$0xff]
      %v2258 = vld [vmem:[%s3 + $0x220] sm:$0xff]
      %v2259 = vld [vmem:[%s3 + $0x228] sm:$0xff]
      %v2260 = vld [vmem:[%s3 + $0x230] sm:$0xff]
      %v2261 = vld [vmem:[%s3 + $0x238] sm:$0xff]
      %v2262 = vld [vmem:[%s3 + $0x240] sm:$0xff]
      %v2263 = vld [vmem:[%s3 + $0x248] sm:$0xff]
      %v2264 = vld [vmem:[%s3 + $0x250] sm:$0xff]
      %v2265 = vld [vmem:[%s3 + $0x258] sm:$0xff]
      %v2266 = vld [vmem:[%s3 + $0x260] sm:$0xff]
      %v2267 = vld [vmem:[%s3 + $0x268] sm:$0xff]
      %v2268 = vld [vmem:[%s3 + $0x270] sm:$0xff]
      %v2269 = vld [vmem:[%s3 + $0x278] sm:$0xff]
      %v2270 = vld [vmem:[%s3 + $0x280] sm:$0xff]
      %v2271 = vld [vmem:[%s3 + $0x288] sm:$0xff]
      %v2272 = vld [vmem:[%s3 + $0x290] sm:$0xff]
      %v2273 = vld [vmem:[%s3 + $0x298] sm:$0xff]
      %v2274 = vld [vmem:[%s3 + $0x2a0] sm:$0xff]
      %v2275 = vld [vmem:[%s3 + $0x2a8] sm:$0xff]
      %v2276 = vld [vmem:[%s3 + $0x2b0] sm:$0xff]
      %v2277 = vld [vmem:[%s3 + $0x2b8] sm:$0xff]
      %v2278 = vld [vmem:[%s3 + $0x2c0] sm:$0xff]
      %v2279 = vld [vmem:[%s3 + $0x2c8] sm:$0xff]
      %v2280 = vld [vmem:[%s3 + $0x2d0] sm:$0xff]
      %v2281 = vld [vmem:[%s3 + $0x2d8] sm:$0xff]
      %v2282 = vld [vmem:[%s3 + $0x2e0] sm:$0xff]
      %v2283 = vld [vmem:[%s3 + $0x2e8] sm:$0xff]
      %v2284 = vld [vmem:[%s3 + $0x2f0] sm:$0xff]
      %v2285 = vld [vmem:[%s3 + $0x2f8] sm:$0xff]
      %v2286 = vld [vmem:[%s3 + $0x300] sm:$0xff]
      %v2287 = vld [vmem:[%s3 + $0x308] sm:$0xff]
      %v2288 = vld [vmem:[%s3 + $0x310] sm:$0xff]
      %v2289 = vld [vmem:[%s3 + $0x318] sm:$0xff]
      %v2290 = vld [vmem:[%s3 + $0x320] sm:$0xff]
      %v2291 = vld [vmem:[%s3 + $0x328] sm:$0xff]
      %v2292 = vld [vmem:[%s3 + $0x330] sm:$0xff]
      %v2293 = vld [vmem:[%s3 + $0x338] sm:$0xff]
      %v2294 = vld [vmem:[%s3 + $0x340] sm:$0xff]
      %v2295 = vld [vmem:[%s3 + $0x348] sm:$0xff]
      %v2296 = vld [vmem:[%s3 + $0x350] sm:$0xff]
      %v2297 = vld [vmem:[%s3 + $0x358] sm:$0xff]
      %v2298 = vld [vmem:[%s3 + $0x360] sm:$0xff]
      %v2299 = vld [vmem:[%s3 + $0x368] sm:$0xff]
      %v2300 = vld [vmem:[%s3 + $0x370] sm:$0xff]
      %v2301 = vld [vmem:[%s3 + $0x378] sm:$0xff]
      %v2302 = vld [vmem:[%s3 + $0x380] sm:$0xff]
      %v2303 = vld [vmem:[%s3 + $0x388] sm:$0xff]
      %v2304 = vld [vmem:[%s3 + $0x390] sm:$0xff]
      %v2305 = vld [vmem:[%s3 + $0x398] sm:$0xff]
      %v2306 = vld [vmem:[%s3 + $0x3a0] sm:$0xff]
      %v2307 = vld [vmem:[%s3 + $0x3a8] sm:$0xff]
      %v2308 = vld [vmem:[%s3 + $0x3b0] sm:$0xff]
      %v2309 = vld [vmem:[%s3 + $0x3b8] sm:$0xff]
      %v2310 = vld [vmem:[%s3 + $0x3c0] sm:$0xff]
      %v2311 = vld [vmem:[%s3 + $0x3c8] sm:$0xff]
      %v2312 = vld [vmem:[%s3 + $0x3d0] sm:$0xff]
      %v2313 = vld [vmem:[%s3 + $0x3d8] sm:$0xff]
      %v2314 = vld [vmem:[%s3 + $0x3e0] sm:$0xff]
      %v2315 = vld [vmem:[%s3 + $0x3e8] sm:$0xff]
      %v2316 = vld [vmem:[%s3 + $0x3f0] sm:$0xff]
      %v2317 = vld [vmem:[%s3 + $0x3f8] sm:$0xff]
      %vm2318 = vcmp.ge.f32.partialorder %v1680, 0.0
      %vm2319 = vcmp.ge.f32.partialorder %v1683, 0.0
      %vm2320 = vcmp.ge.f32.partialorder %v1688, 0.0
      %vm2321 = vcmp.ge.f32.partialorder %v1691, 0.0
      %vm2322 = vcmp.ge.f32.partialorder %v1696, 0.0
      %vm2323 = vcmp.ge.f32.partialorder %v1699, 0.0
      %vm2324 = vcmp.ge.f32.partialorder %v1704, 0.0
      %vm2325 = vcmp.ge.f32.partialorder %v1707, 0.0
      %vm2326 = vcmp.ge.f32.partialorder %v1712, 0.0
      %vm2327 = vcmp.ge.f32.partialorder %v1715, 0.0
      %vm2328 = vcmp.ge.f32.partialorder %v1720, 0.0
      %vm2329 = vcmp.ge.f32.partialorder %v1723, 0.0
      %vm2330 = vcmp.ge.f32.partialorder %v1728, 0.0
      %vm2331 = vcmp.ge.f32.partialorder %v1731, 0.0
      %vm2332 = vcmp.ge.f32.partialorder %v1736, 0.0
      %vm2333 = vcmp.ge.f32.partialorder %v1739, 0.0
      %vm2334 = vcmp.ge.f32.partialorder %v1744, 0.0
      %vm2335 = vcmp.ge.f32.partialorder %v1747, 0.0
      %vm2336 = vcmp.ge.f32.partialorder %v1752, 0.0
      %vm2337 = vcmp.ge.f32.partialorder %v1755, 0.0
      %vm2338 = vcmp.ge.f32.partialorder %v1760, 0.0
      %vm2339 = vcmp.ge.f32.partialorder %v1763, 0.0
      %vm2340 = vcmp.ge.f32.partialorder %v1768, 0.0
      %vm2341 = vcmp.ge.f32.partialorder %v1771, 0.0
      %vm2342 = vcmp.ge.f32.partialorder %v1776, 0.0
      %vm2343 = vcmp.ge.f32.partialorder %v1779, 0.0
      %vm2344 = vcmp.ge.f32.partialorder %v1784, 0.0
      %vm2345 = vcmp.ge.f32.partialorder %v1787, 0.0
      %vm2346 = vcmp.ge.f32.partialorder %v1792, 0.0
      %vm2347 = vcmp.ge.f32.partialorder %v1795, 0.0
      %vm2348 = vcmp.ge.f32.partialorder %v1800, 0.0
      %vm2349 = vcmp.ge.f32.partialorder %v1803, 0.0
      %vm2350 = vcmp.ge.f32.partialorder %v1808, 0.0
      %vm2351 = vcmp.ge.f32.partialorder %v1811, 0.0
      %vm2352 = vcmp.ge.f32.partialorder %v1816, 0.0
      %vm2353 = vcmp.ge.f32.partialorder %v1819, 0.0
      %vm2354 = vcmp.ge.f32.partialorder %v1824, 0.0
      %vm2355 = vcmp.ge.f32.partialorder %v1827, 0.0
      %vm2356 = vcmp.ge.f32.partialorder %v1832, 0.0
      %vm2357 = vcmp.ge.f32.partialorder %v1835, 0.0
      %vm2358 = vcmp.ge.f32.partialorder %v1840, 0.0
      %vm2359 = vcmp.ge.f32.partialorder %v1843, 0.0
      %vm2360 = vcmp.ge.f32.partialorder %v1848, 0.0
      %vm2361 = vcmp.ge.f32.partialorder %v1851, 0.0
      %vm2362 = vcmp.ge.f32.partialorder %v1856, 0.0
      %vm2363 = vcmp.ge.f32.partialorder %v1859, 0.0
      %vm2364 = vcmp.ge.f32.partialorder %v1864, 0.0
      %vm2365 = vcmp.ge.f32.partialorder %v1867, 0.0
      %vm2366 = vcmp.ge.f32.partialorder %v1872, 0.0
      %vm2367 = vcmp.ge.f32.partialorder %v1875, 0.0
      %vm2368 = vcmp.ge.f32.partialorder %v1880, 0.0
      %vm2369 = vcmp.ge.f32.partialorder %v1883, 0.0
      %vm2370 = vcmp.ge.f32.partialorder %v1888, 0.0
      %vm2371 = vcmp.ge.f32.partialorder %v1891, 0.0
      %vm2372 = vcmp.ge.f32.partialorder %v1896, 0.0
      %vm2373 = vcmp.ge.f32.partialorder %v1899, 0.0
      %vm2374 = vcmp.ge.f32.partialorder %v1904, 0.0
      %vm2375 = vcmp.ge.f32.partialorder %v1907, 0.0
      %vm2376 = vcmp.ge.f32.partialorder %v1912, 0.0
      %vm2377 = vcmp.ge.f32.partialorder %v1915, 0.0
      %vm2378 = vcmp.ge.f32.partialorder %v1920, 0.0
      %vm2379 = vcmp.ge.f32.partialorder %v1923, 0.0
      %vm2380 = vcmp.ge.f32.partialorder %v1928, 0.0
      %vm2381 = vcmp.ge.f32.partialorder %v1931, 0.0
      %vm2382 = vcmp.ge.f32.partialorder %v1936, 0.0
      %vm2383 = vcmp.ge.f32.partialorder %v1939, 0.0
      %vm2384 = vcmp.ge.f32.partialorder %v1944, 0.0
      %vm2385 = vcmp.ge.f32.partialorder %v1947, 0.0
      %vm2386 = vcmp.ge.f32.partialorder %v1952, 0.0
      %vm2387 = vcmp.ge.f32.partialorder %v1955, 0.0
      %vm2388 = vcmp.ge.f32.partialorder %v1960, 0.0
      %vm2389 = vcmp.ge.f32.partialorder %v1963, 0.0
      %vm2390 = vcmp.ge.f32.partialorder %v1968, 0.0
      %vm2391 = vcmp.ge.f32.partialorder %v1971, 0.0
      %vm2392 = vcmp.ge.f32.partialorder %v1976, 0.0
      %vm2393 = vcmp.ge.f32.partialorder %v1979, 0.0
      %vm2394 = vcmp.ge.f32.partialorder %v1984, 0.0
      %vm2395 = vcmp.ge.f32.partialorder %v1987, 0.0
      %vm2396 = vcmp.ge.f32.partialorder %v1992, 0.0
      %vm2397 = vcmp.ge.f32.partialorder %v1995, 0.0
      %vm2398 = vcmp.ge.f32.partialorder %v2000, 0.0
      %vm2399 = vcmp.ge.f32.partialorder %v2003, 0.0
      %vm2400 = vcmp.ge.f32.partialorder %v2008, 0.0
      %vm2401 = vcmp.ge.f32.partialorder %v2011, 0.0
      %vm2402 = vcmp.ge.f32.partialorder %v2016, 0.0
      %vm2403 = vcmp.ge.f32.partialorder %v2019, 0.0
      %vm2404 = vcmp.ge.f32.partialorder %v2024, 0.0
      %vm2405 = vcmp.ge.f32.partialorder %v2027, 0.0
      %vm2406 = vcmp.ge.f32.partialorder %v2032, 0.0
      %vm2407 = vcmp.ge.f32.partialorder %v2035, 0.0
      %vm2408 = vcmp.ge.f32.partialorder %v2040, 0.0
      %vm2409 = vcmp.ge.f32.partialorder %v2043, 0.0
      %vm2410 = vcmp.ge.f32.partialorder %v2048, 0.0
      %vm2411 = vcmp.ge.f32.partialorder %v2051, 0.0
      %vm2412 = vcmp.ge.f32.partialorder %v2056, 0.0
      %vm2413 = vcmp.ge.f32.partialorder %v2059, 0.0
      %vm2414 = vcmp.ge.f32.partialorder %v2064, 0.0
      %vm2415 = vcmp.ge.f32.partialorder %v2067, 0.0
      %vm2416 = vcmp.ge.f32.partialorder %v2072, 0.0
      %vm2417 = vcmp.ge.f32.partialorder %v2075, 0.0
      %vm2418 = vcmp.ge.f32.partialorder %v2080, 0.0
      %vm2419 = vcmp.ge.f32.partialorder %v2083, 0.0
      %vm2420 = vcmp.ge.f32.partialorder %v2088, 0.0
      %vm2421 = vcmp.ge.f32.partialorder %v2091, 0.0
      %vm2422 = vcmp.ge.f32.partialorder %v2096, 0.0
      %vm2423 = vcmp.ge.f32.partialorder %v2099, 0.0
      %vm2424 = vcmp.ge.f32.partialorder %v2104, 0.0
      %vm2425 = vcmp.ge.f32.partialorder %v2107, 0.0
      %vm2426 = vcmp.ge.f32.partialorder %v2112, 0.0
      %vm2427 = vcmp.ge.f32.partialorder %v2115, 0.0
      %vm2428 = vcmp.ge.f32.partialorder %v2120, 0.0
      %vm2429 = vcmp.ge.f32.partialorder %v2123, 0.0
      %vm2430 = vcmp.ge.f32.partialorder %v2128, 0.0
      %vm2431 = vcmp.ge.f32.partialorder %v2131, 0.0
      %vm2432 = vcmp.ge.f32.partialorder %v2136, 0.0
      %vm2433 = vcmp.ge.f32.partialorder %v2139, 0.0
      %vm2434 = vcmp.ge.f32.partialorder %v2144, 0.0
      %vm2435 = vcmp.ge.f32.partialorder %v2147, 0.0
      %vm2436 = vcmp.ge.f32.partialorder %v2152, 0.0
      %vm2437 = vcmp.ge.f32.partialorder %v2155, 0.0
      %vm2438 = vcmp.ge.f32.partialorder %v2160, 0.0
      %vm2439 = vcmp.ge.f32.partialorder %v2163, 0.0
      %vm2440 = vcmp.ge.f32.partialorder %v2168, 0.0
      %vm2441 = vcmp.ge.f32.partialorder %v2171, 0.0
      %vm2442 = vcmp.ge.f32.partialorder %v2176, 0.0
      %vm2443 = vcmp.ge.f32.partialorder %v2179, 0.0
      %vm2444 = vcmp.ge.f32.partialorder %v2184, 0.0
      %vm2445 = vcmp.ge.f32.partialorder %v2187, 0.0
      %2447 = vset.pattern.permute.xlu0 0
      %2448 = vperm.xlu0 %2447, %v2190
      %v2449 = vpop.permute.xlu0 %2448
      %2452 = vset.pattern.permute.xlu0 0
      %2453 = vperm.xlu0 %2452, %v2191
      %v2454 = vpop.permute.xlu0 %2453
      %2457 = vset.pattern.permute.xlu0 0
      %2458 = vperm.xlu0 %2457, %v2192
      %v2459 = vpop.permute.xlu0 %2458
      %2462 = vset.pattern.permute.xlu0 0
      %2463 = vperm.xlu0 %2462, %v2193
      %v2464 = vpop.permute.xlu0 %2463
      %2467 = vset.pattern.permute.xlu0 0
      %2468 = vperm.xlu0 %2467, %v2194
      %v2469 = vpop.permute.xlu0 %2468
      %2472 = vset.pattern.permute.xlu0 0
      %2473 = vperm.xlu0 %2472, %v2195
      %v2474 = vpop.permute.xlu0 %2473
      %2477 = vset.pattern.permute.xlu0 0
      %2478 = vperm.xlu0 %2477, %v2196
      %v2479 = vpop.permute.xlu0 %2478
      %2482 = vset.pattern.permute.xlu0 0
      %2483 = vperm.xlu0 %2482, %v2197
      %v2484 = vpop.permute.xlu0 %2483
      %2487 = vset.pattern.permute.xlu0 0
      %2488 = vperm.xlu0 %2487, %v2198
      %v2489 = vpop.permute.xlu0 %2488
      %2492 = vset.pattern.permute.xlu0 0
      %2493 = vperm.xlu0 %2492, %v2199
      %v2494 = vpop.permute.xlu0 %2493
      %2497 = vset.pattern.permute.xlu0 0
      %2498 = vperm.xlu0 %2497, %v2200
      %v2499 = vpop.permute.xlu0 %2498
      %2502 = vset.pattern.permute.xlu0 0
      %2503 = vperm.xlu0 %2502, %v2201
      %v2504 = vpop.permute.xlu0 %2503
      %2507 = vset.pattern.permute.xlu0 0
      %2508 = vperm.xlu0 %2507, %v2202
      %v2509 = vpop.permute.xlu0 %2508
      %2512 = vset.pattern.permute.xlu0 0
      %2513 = vperm.xlu0 %2512, %v2203
      %v2514 = vpop.permute.xlu0 %2513
      %2517 = vset.pattern.permute.xlu0 0
      %2518 = vperm.xlu0 %2517, %v2204
      %v2519 = vpop.permute.xlu0 %2518
      %2522 = vset.pattern.permute.xlu0 0
      %2523 = vperm.xlu0 %2522, %v2205
      %v2524 = vpop.permute.xlu0 %2523
      %2527 = vset.pattern.permute.xlu0 0
      %2528 = vperm.xlu0 %2527, %v2206
      %v2529 = vpop.permute.xlu0 %2528
      %2532 = vset.pattern.permute.xlu0 0
      %2533 = vperm.xlu0 %2532, %v2207
      %v2534 = vpop.permute.xlu0 %2533
      %2537 = vset.pattern.permute.xlu0 0
      %2538 = vperm.xlu0 %2537, %v2208
      %v2539 = vpop.permute.xlu0 %2538
      %2542 = vset.pattern.permute.xlu0 0
      %2543 = vperm.xlu0 %2542, %v2209
      %v2544 = vpop.permute.xlu0 %2543
      %2547 = vset.pattern.permute.xlu0 0
      %2548 = vperm.xlu0 %2547, %v2210
      %v2549 = vpop.permute.xlu0 %2548
      %2552 = vset.pattern.permute.xlu0 0
      %2553 = vperm.xlu0 %2552, %v2211
      %v2554 = vpop.permute.xlu0 %2553
      %2557 = vset.pattern.permute.xlu0 0
      %2558 = vperm.xlu0 %2557, %v2212
      %v2559 = vpop.permute.xlu0 %2558
      %2562 = vset.pattern.permute.xlu0 0
      %2563 = vperm.xlu0 %2562, %v2213
      %v2564 = vpop.permute.xlu0 %2563
      %2567 = vset.pattern.permute.xlu0 0
      %2568 = vperm.xlu0 %2567, %v2214
      %v2569 = vpop.permute.xlu0 %2568
      %2572 = vset.pattern.permute.xlu0 0
      %2573 = vperm.xlu0 %2572, %v2215
      %v2574 = vpop.permute.xlu0 %2573
      %2577 = vset.pattern.permute.xlu0 0
      %2578 = vperm.xlu0 %2577, %v2216
      %v2579 = vpop.permute.xlu0 %2578
      %2582 = vset.pattern.permute.xlu0 0
      %2583 = vperm.xlu0 %2582, %v2217
      %v2584 = vpop.permute.xlu0 %2583
      %2587 = vset.pattern.permute.xlu0 0
      %2588 = vperm.xlu0 %2587, %v2218
      %v2589 = vpop.permute.xlu0 %2588
      %2592 = vset.pattern.permute.xlu0 0
      %2593 = vperm.xlu0 %2592, %v2219
      %v2594 = vpop.permute.xlu0 %2593
      %2597 = vset.pattern.permute.xlu0 0
      %2598 = vperm.xlu0 %2597, %v2220
      %v2599 = vpop.permute.xlu0 %2598
      %2602 = vset.pattern.permute.xlu0 0
      %2603 = vperm.xlu0 %2602, %v2221
      %v2604 = vpop.permute.xlu0 %2603
      %2607 = vset.pattern.permute.xlu0 0
      %2608 = vperm.xlu0 %2607, %v2222
      %v2609 = vpop.permute.xlu0 %2608
      %2612 = vset.pattern.permute.xlu0 0
      %2613 = vperm.xlu0 %2612, %v2223
      %v2614 = vpop.permute.xlu0 %2613
      %2617 = vset.pattern.permute.xlu0 0
      %2618 = vperm.xlu0 %2617, %v2224
      %v2619 = vpop.permute.xlu0 %2618
      %2622 = vset.pattern.permute.xlu0 0
      %2623 = vperm.xlu0 %2622, %v2225
      %v2624 = vpop.permute.xlu0 %2623
      %2627 = vset.pattern.permute.xlu0 0
      %2628 = vperm.xlu0 %2627, %v2226
      %v2629 = vpop.permute.xlu0 %2628
      %2632 = vset.pattern.permute.xlu0 0
      %2633 = vperm.xlu0 %2632, %v2227
      %v2634 = vpop.permute.xlu0 %2633
      %2637 = vset.pattern.permute.xlu0 0
      %2638 = vperm.xlu0 %2637, %v2228
      %v2639 = vpop.permute.xlu0 %2638
      %2642 = vset.pattern.permute.xlu0 0
      %2643 = vperm.xlu0 %2642, %v2229
      %v2644 = vpop.permute.xlu0 %2643
      %2647 = vset.pattern.permute.xlu0 0
      %2648 = vperm.xlu0 %2647, %v2230
      %v2649 = vpop.permute.xlu0 %2648
      %2652 = vset.pattern.permute.xlu0 0
      %2653 = vperm.xlu0 %2652, %v2231
      %v2654 = vpop.permute.xlu0 %2653
      %2657 = vset.pattern.permute.xlu0 0
      %2658 = vperm.xlu0 %2657, %v2232
      %v2659 = vpop.permute.xlu0 %2658
      %2662 = vset.pattern.permute.xlu0 0
      %2663 = vperm.xlu0 %2662, %v2233
      %v2664 = vpop.permute.xlu0 %2663
      %2667 = vset.pattern.permute.xlu0 0
      %2668 = vperm.xlu0 %2667, %v2234
      %v2669 = vpop.permute.xlu0 %2668
      %2672 = vset.pattern.permute.xlu0 0
      %2673 = vperm.xlu0 %2672, %v2235
      %v2674 = vpop.permute.xlu0 %2673
      %2677 = vset.pattern.permute.xlu0 0
      %2678 = vperm.xlu0 %2677, %v2236
      %v2679 = vpop.permute.xlu0 %2678
      %2682 = vset.pattern.permute.xlu0 0
      %2683 = vperm.xlu0 %2682, %v2237
      %v2684 = vpop.permute.xlu0 %2683
      %2687 = vset.pattern.permute.xlu0 0
      %2688 = vperm.xlu0 %2687, %v2238
      %v2689 = vpop.permute.xlu0 %2688
      %2692 = vset.pattern.permute.xlu0 0
      %2693 = vperm.xlu0 %2692, %v2239
      %v2694 = vpop.permute.xlu0 %2693
      %2697 = vset.pattern.permute.xlu0 0
      %2698 = vperm.xlu0 %2697, %v2240
      %v2699 = vpop.permute.xlu0 %2698
      %2702 = vset.pattern.permute.xlu0 0
      %2703 = vperm.xlu0 %2702, %v2241
      %v2704 = vpop.permute.xlu0 %2703
      %2707 = vset.pattern.permute.xlu0 0
      %2708 = vperm.xlu0 %2707, %v2242
      %v2709 = vpop.permute.xlu0 %2708
      %2712 = vset.pattern.permute.xlu0 0
      %2713 = vperm.xlu0 %2712, %v2243
      %v2714 = vpop.permute.xlu0 %2713
      %2717 = vset.pattern.permute.xlu0 0
      %2718 = vperm.xlu0 %2717, %v2244
      %v2719 = vpop.permute.xlu0 %2718
      %2722 = vset.pattern.permute.xlu0 0
      %2723 = vperm.xlu0 %2722, %v2245
      %v2724 = vpop.permute.xlu0 %2723
      %2727 = vset.pattern.permute.xlu0 0
      %2728 = vperm.xlu0 %2727, %v2246
      %v2729 = vpop.permute.xlu0 %2728
      %2732 = vset.pattern.permute.xlu0 0
      %2733 = vperm.xlu0 %2732, %v2247
      %v2734 = vpop.permute.xlu0 %2733
      %2737 = vset.pattern.permute.xlu0 0
      %2738 = vperm.xlu0 %2737, %v2248
      %v2739 = vpop.permute.xlu0 %2738
      %2742 = vset.pattern.permute.xlu0 0
      %2743 = vperm.xlu0 %2742, %v2249
      %v2744 = vpop.permute.xlu0 %2743
      %2747 = vset.pattern.permute.xlu0 0
      %2748 = vperm.xlu0 %2747, %v2250
      %v2749 = vpop.permute.xlu0 %2748
      %2752 = vset.pattern.permute.xlu0 0
      %2753 = vperm.xlu0 %2752, %v2251
      %v2754 = vpop.permute.xlu0 %2753
      %2757 = vset.pattern.permute.xlu0 0
      %2758 = vperm.xlu0 %2757, %v2252
      %v2759 = vpop.permute.xlu0 %2758
      %2762 = vset.pattern.permute.xlu0 0
      %2763 = vperm.xlu0 %2762, %v2253
      %v2764 = vpop.permute.xlu0 %2763
      %2767 = vset.pattern.permute.xlu0 0
      %2768 = vperm.xlu0 %2767, %v2254
      %v2769 = vpop.permute.xlu0 %2768
      %2772 = vset.pattern.permute.xlu0 0
      %2773 = vperm.xlu0 %2772, %v2255
      %v2774 = vpop.permute.xlu0 %2773
      %2777 = vset.pattern.permute.xlu0 0
      %2778 = vperm.xlu0 %2777, %v2256
      %v2779 = vpop.permute.xlu0 %2778
      %2782 = vset.pattern.permute.xlu0 0
      %2783 = vperm.xlu0 %2782, %v2257
      %v2784 = vpop.permute.xlu0 %2783
      %2787 = vset.pattern.permute.xlu0 0
      %2788 = vperm.xlu0 %2787, %v2258
      %v2789 = vpop.permute.xlu0 %2788
      %2792 = vset.pattern.permute.xlu0 0
      %2793 = vperm.xlu0 %2792, %v2259
      %v2794 = vpop.permute.xlu0 %2793
      %2797 = vset.pattern.permute.xlu0 0
      %2798 = vperm.xlu0 %2797, %v2260
      %v2799 = vpop.permute.xlu0 %2798
      %2802 = vset.pattern.permute.xlu0 0
      %2803 = vperm.xlu0 %2802, %v2261
      %v2804 = vpop.permute.xlu0 %2803
      %2807 = vset.pattern.permute.xlu0 0
      %2808 = vperm.xlu0 %2807, %v2262
      %v2809 = vpop.permute.xlu0 %2808
      %2812 = vset.pattern.permute.xlu0 0
      %2813 = vperm.xlu0 %2812, %v2263
      %v2814 = vpop.permute.xlu0 %2813
      %2817 = vset.pattern.permute.xlu0 0
      %2818 = vperm.xlu0 %2817, %v2264
      %v2819 = vpop.permute.xlu0 %2818
      %2822 = vset.pattern.permute.xlu0 0
      %2823 = vperm.xlu0 %2822, %v2265
      %v2824 = vpop.permute.xlu0 %2823
      %2827 = vset.pattern.permute.xlu0 0
      %2828 = vperm.xlu0 %2827, %v2266
      %v2829 = vpop.permute.xlu0 %2828
      %2832 = vset.pattern.permute.xlu0 0
      %2833 = vperm.xlu0 %2832, %v2267
      %v2834 = vpop.permute.xlu0 %2833
      %2837 = vset.pattern.permute.xlu0 0
      %2838 = vperm.xlu0 %2837, %v2268
      %v2839 = vpop.permute.xlu0 %2838
      %2842 = vset.pattern.permute.xlu0 0
      %2843 = vperm.xlu0 %2842, %v2269
      %v2844 = vpop.permute.xlu0 %2843
      %2847 = vset.pattern.permute.xlu0 0
      %2848 = vperm.xlu0 %2847, %v2270
      %v2849 = vpop.permute.xlu0 %2848
      %2852 = vset.pattern.permute.xlu0 0
      %2853 = vperm.xlu0 %2852, %v2271
      %v2854 = vpop.permute.xlu0 %2853
      %2857 = vset.pattern.permute.xlu0 0
      %2858 = vperm.xlu0 %2857, %v2272
      %v2859 = vpop.permute.xlu0 %2858
      %2862 = vset.pattern.permute.xlu0 0
      %2863 = vperm.xlu0 %2862, %v2273
      %v2864 = vpop.permute.xlu0 %2863
      %2867 = vset.pattern.permute.xlu0 0
      %2868 = vperm.xlu0 %2867, %v2274
      %v2869 = vpop.permute.xlu0 %2868
      %2872 = vset.pattern.permute.xlu0 0
      %2873 = vperm.xlu0 %2872, %v2275
      %v2874 = vpop.permute.xlu0 %2873
      %2877 = vset.pattern.permute.xlu0 0
      %2878 = vperm.xlu0 %2877, %v2276
      %v2879 = vpop.permute.xlu0 %2878
      %2882 = vset.pattern.permute.xlu0 0
      %2883 = vperm.xlu0 %2882, %v2277
      %v2884 = vpop.permute.xlu0 %2883
      %2887 = vset.pattern.permute.xlu0 0
      %2888 = vperm.xlu0 %2887, %v2278
      %v2889 = vpop.permute.xlu0 %2888
      %2892 = vset.pattern.permute.xlu0 0
      %2893 = vperm.xlu0 %2892, %v2279
      %v2894 = vpop.permute.xlu0 %2893
      %2897 = vset.pattern.permute.xlu0 0
      %2898 = vperm.xlu0 %2897, %v2280
      %v2899 = vpop.permute.xlu0 %2898
      %2902 = vset.pattern.permute.xlu0 0
      %2903 = vperm.xlu0 %2902, %v2281
      %v2904 = vpop.permute.xlu0 %2903
      %2907 = vset.pattern.permute.xlu0 0
      %2908 = vperm.xlu0 %2907, %v2282
      %v2909 = vpop.permute.xlu0 %2908
      %2912 = vset.pattern.permute.xlu0 0
      %2913 = vperm.xlu0 %2912, %v2283
      %v2914 = vpop.permute.xlu0 %2913
      %2917 = vset.pattern.permute.xlu0 0
      %2918 = vperm.xlu0 %2917, %v2284
      %v2919 = vpop.permute.xlu0 %2918
      %2922 = vset.pattern.permute.xlu0 0
      %2923 = vperm.xlu0 %2922, %v2285
      %v2924 = vpop.permute.xlu0 %2923
      %2927 = vset.pattern.permute.xlu0 0
      %2928 = vperm.xlu0 %2927, %v2286
      %v2929 = vpop.permute.xlu0 %2928
      %2932 = vset.pattern.permute.xlu0 0
      %2933 = vperm.xlu0 %2932, %v2287
      %v2934 = vpop.permute.xlu0 %2933
      %2937 = vset.pattern.permute.xlu0 0
      %2938 = vperm.xlu0 %2937, %v2288
      %v2939 = vpop.permute.xlu0 %2938
      %2942 = vset.pattern.permute.xlu0 0
      %2943 = vperm.xlu0 %2942, %v2289
      %v2944 = vpop.permute.xlu0 %2943
      %2947 = vset.pattern.permute.xlu0 0
      %2948 = vperm.xlu0 %2947, %v2290
      %v2949 = vpop.permute.xlu0 %2948
      %2952 = vset.pattern.permute.xlu0 0
      %2953 = vperm.xlu0 %2952, %v2291
      %v2954 = vpop.permute.xlu0 %2953
      %2957 = vset.pattern.permute.xlu0 0
      %2958 = vperm.xlu0 %2957, %v2292
      %v2959 = vpop.permute.xlu0 %2958
      %2962 = vset.pattern.permute.xlu0 0
      %2963 = vperm.xlu0 %2962, %v2293
      %v2964 = vpop.permute.xlu0 %2963
      %2967 = vset.pattern.permute.xlu0 0
      %2968 = vperm.xlu0 %2967, %v2294
      %v2969 = vpop.permute.xlu0 %2968
      %2972 = vset.pattern.permute.xlu0 0
      %2973 = vperm.xlu0 %2972, %v2295
      %v2974 = vpop.permute.xlu0 %2973
      %2977 = vset.pattern.permute.xlu0 0
      %2978 = vperm.xlu0 %2977, %v2296
      %v2979 = vpop.permute.xlu0 %2978
      %2982 = vset.pattern.permute.xlu0 0
      %2983 = vperm.xlu0 %2982, %v2297
      %v2984 = vpop.permute.xlu0 %2983
      %2987 = vset.pattern.permute.xlu0 0
      %2988 = vperm.xlu0 %2987, %v2298
      %v2989 = vpop.permute.xlu0 %2988
      %2992 = vset.pattern.permute.xlu0 0
      %2993 = vperm.xlu0 %2992, %v2299
      %v2994 = vpop.permute.xlu0 %2993
      %2997 = vset.pattern.permute.xlu0 0
      %2998 = vperm.xlu0 %2997, %v2300
      %v2999 = vpop.permute.xlu0 %2998
      %3002 = vset.pattern.permute.xlu0 0
      %3003 = vperm.xlu0 %3002, %v2301
      %v3004 = vpop.permute.xlu0 %3003
      %3007 = vset.pattern.permute.xlu0 0
      %3008 = vperm.xlu0 %3007, %v2302
      %v3009 = vpop.permute.xlu0 %3008
      %3012 = vset.pattern.permute.xlu0 0
      %3013 = vperm.xlu0 %3012, %v2303
      %v3014 = vpop.permute.xlu0 %3013
      %3017 = vset.pattern.permute.xlu0 0
      %3018 = vperm.xlu0 %3017, %v2304
      %v3019 = vpop.permute.xlu0 %3018
      %3022 = vset.pattern.permute.xlu0 0
      %3023 = vperm.xlu0 %3022, %v2305
      %v3024 = vpop.permute.xlu0 %3023
      %3027 = vset.pattern.permute.xlu0 0
      %3028 = vperm.xlu0 %3027, %v2306
      %v3029 = vpop.permute.xlu0 %3028
      %3032 = vset.pattern.permute.xlu0 0
      %3033 = vperm.xlu0 %3032, %v2307
      %v3034 = vpop.permute.xlu0 %3033
      %3037 = vset.pattern.permute.xlu0 0
      %3038 = vperm.xlu0 %3037, %v2308
      %v3039 = vpop.permute.xlu0 %3038
      %3042 = vset.pattern.permute.xlu0 0
      %3043 = vperm.xlu0 %3042, %v2309
      %v3044 = vpop.permute.xlu0 %3043
      %3047 = vset.pattern.permute.xlu0 0
      %3048 = vperm.xlu0 %3047, %v2310
      %v3049 = vpop.permute.xlu0 %3048
      %3052 = vset.pattern.permute.xlu0 0
      %3053 = vperm.xlu0 %3052, %v2311
      %v3054 = vpop.permute.xlu0 %3053
      %3057 = vset.pattern.permute.xlu0 0
      %3058 = vperm.xlu0 %3057, %v2312
      %v3059 = vpop.permute.xlu0 %3058
      %3062 = vset.pattern.permute.xlu0 0
      %3063 = vperm.xlu0 %3062, %v2313
      %v3064 = vpop.permute.xlu0 %3063
      %3067 = vset.pattern.permute.xlu0 0
      %3068 = vperm.xlu0 %3067, %v2314
      %v3069 = vpop.permute.xlu0 %3068
      %3072 = vset.pattern.permute.xlu0 0
      %3073 = vperm.xlu0 %3072, %v2315
      %v3074 = vpop.permute.xlu0 %3073
      %3077 = vset.pattern.permute.xlu0 0
      %3078 = vperm.xlu0 %3077, %v2316
      %v3079 = vpop.permute.xlu0 %3078
      %3082 = vset.pattern.permute.xlu0 0
      %3083 = vperm.xlu0 %3082, %v2317
      %v3084 = vpop.permute.xlu0 %3083
      %v3086 = vmul.f32 %v2449, %v1680
      %v3087 = vmul.f32 %v2454, %v1683
      %v3088 = vmul.f32 %v2459, %v1688
      %v3089 = vmul.f32 %v2464, %v1691
      %v3090 = vmul.f32 %v2469, %v1696
      %v3091 = vmul.f32 %v2474, %v1699
      %v3092 = vmul.f32 %v2479, %v1704
      %v3093 = vmul.f32 %v2484, %v1707
      %v3094 = vmul.f32 %v2489, %v1712
      %v3095 = vmul.f32 %v2494, %v1715
      %v3096 = vmul.f32 %v2499, %v1720
      %v3097 = vmul.f32 %v2504, %v1723
      %v3098 = vmul.f32 %v2509, %v1728
      %v3099 = vmul.f32 %v2514, %v1731
      %v3100 = vmul.f32 %v2519, %v1736
      %v3101 = vmul.f32 %v2524, %v1739
      %v3102 = vmul.f32 %v2529, %v1744
      %v3103 = vmul.f32 %v2534, %v1747
      %v3104 = vmul.f32 %v2539, %v1752
      %v3105 = vmul.f32 %v2544, %v1755
      %v3106 = vmul.f32 %v2549, %v1760
      %v3107 = vmul.f32 %v2554, %v1763
      %v3108 = vmul.f32 %v2559, %v1768
      %v3109 = vmul.f32 %v2564, %v1771
      %v3110 = vmul.f32 %v2569, %v1776
      %v3111 = vmul.f32 %v2574, %v1779
      %v3112 = vmul.f32 %v2579, %v1784
      %v3113 = vmul.f32 %v2584, %v1787
      %v3114 = vmul.f32 %v2589, %v1792
      %v3115 = vmul.f32 %v2594, %v1795
      %v3116 = vmul.f32 %v2599, %v1800
      %v3117 = vmul.f32 %v2604, %v1803
      %v3118 = vmul.f32 %v2609, %v1808
      %v3119 = vmul.f32 %v2614, %v1811
      %v3120 = vmul.f32 %v2619, %v1816
      %v3121 = vmul.f32 %v2624, %v1819
      %v3122 = vmul.f32 %v2629, %v1824
      %v3123 = vmul.f32 %v2634, %v1827
      %v3124 = vmul.f32 %v2639, %v1832
      %v3125 = vmul.f32 %v2644, %v1835
      %v3126 = vmul.f32 %v2649, %v1840
      %v3127 = vmul.f32 %v2654, %v1843
      %v3128 = vmul.f32 %v2659, %v1848
      %v3129 = vmul.f32 %v2664, %v1851
      %v3130 = vmul.f32 %v2669, %v1856
      %v3131 = vmul.f32 %v2674, %v1859
      %v3132 = vmul.f32 %v2679, %v1864
      %v3133 = vmul.f32 %v2684, %v1867
      %v3134 = vmul.f32 %v2689, %v1872
      %v3135 = vmul.f32 %v2694, %v1875
      %v3136 = vmul.f32 %v2699, %v1880
      %v3137 = vmul.f32 %v2704, %v1883
      %v3138 = vmul.f32 %v2709, %v1888
      %v3139 = vmul.f32 %v2714, %v1891
      %v3140 = vmul.f32 %v2719, %v1896
      %v3141 = vmul.f32 %v2724, %v1899
      %v3142 = vmul.f32 %v2729, %v1904
      %v3143 = vmul.f32 %v2734, %v1907
      %v3144 = vmul.f32 %v2739, %v1912
      %v3145 = vmul.f32 %v2744, %v1915
      %v3146 = vmul.f32 %v2749, %v1920
      %v3147 = vmul.f32 %v2754, %v1923
      %v3148 = vmul.f32 %v2759, %v1928
      %v3149 = vmul.f32 %v2764, %v1931
      %v3150 = vmul.f32 %v2769, %v1936
      %v3151 = vmul.f32 %v2774, %v1939
      %v3152 = vmul.f32 %v2779, %v1944
      %v3153 = vmul.f32 %v2784, %v1947
      %v3154 = vmul.f32 %v2789, %v1952
      %v3155 = vmul.f32 %v2794, %v1955
      %v3156 = vmul.f32 %v2799, %v1960
      %v3157 = vmul.f32 %v2804, %v1963
      %v3158 = vmul.f32 %v2809, %v1968
      %v3159 = vmul.f32 %v2814, %v1971
      %v3160 = vmul.f32 %v2819, %v1976
      %v3161 = vmul.f32 %v2824, %v1979
      %v3162 = vmul.f32 %v2829, %v1984
      %v3163 = vmul.f32 %v2834, %v1987
      %v3164 = vmul.f32 %v2839, %v1992
      %v3165 = vmul.f32 %v2844, %v1995
      %v3166 = vmul.f32 %v2849, %v2000
      %v3167 = vmul.f32 %v2854, %v2003
      %v3168 = vmul.f32 %v2859, %v2008
      %v3169 = vmul.f32 %v2864, %v2011
      %v3170 = vmul.f32 %v2869, %v2016
      %v3171 = vmul.f32 %v2874, %v2019
      %v3172 = vmul.f32 %v2879, %v2024
      %v3173 = vmul.f32 %v2884, %v2027
      %v3174 = vmul.f32 %v2889, %v2032
      %v3175 = vmul.f32 %v2894, %v2035
      %v3176 = vmul.f32 %v2899, %v2040
      %v3177 = vmul.f32 %v2904, %v2043
      %v3178 = vmul.f32 %v2909, %v2048
      %v3179 = vmul.f32 %v2914, %v2051
      %v3180 = vmul.f32 %v2919, %v2056
      %v3181 = vmul.f32 %v2924, %v2059
      %v3182 = vmul.f32 %v2929, %v2064
      %v3183 = vmul.f32 %v2934, %v2067
      %v3184 = vmul.f32 %v2939, %v2072
      %v3185 = vmul.f32 %v2944, %v2075
      %v3186 = vmul.f32 %v2949, %v2080
      %v3187 = vmul.f32 %v2954, %v2083
      %v3188 = vmul.f32 %v2959, %v2088
      %v3189 = vmul.f32 %v2964, %v2091
      %v3190 = vmul.f32 %v2969, %v2096
      %v3191 = vmul.f32 %v2974, %v2099
      %v3192 = vmul.f32 %v2979, %v2104
      %v3193 = vmul.f32 %v2984, %v2107
      %v3194 = vmul.f32 %v2989, %v2112
      %v3195 = vmul.f32 %v2994, %v2115
      %v3196 = vmul.f32 %v2999, %v2120
      %v3197 = vmul.f32 %v3004, %v2123
      %v3198 = vmul.f32 %v3009, %v2128
      %v3199 = vmul.f32 %v3014, %v2131
      %v3200 = vmul.f32 %v3019, %v2136
      %v3201 = vmul.f32 %v3024, %v2139
      %v3202 = vmul.f32 %v3029, %v2144
      %v3203 = vmul.f32 %v3034, %v2147
      %v3204 = vmul.f32 %v3039, %v2152
      %v3205 = vmul.f32 %v3044, %v2155
      %v3206 = vmul.f32 %v3049, %v2160
      %v3207 = vmul.f32 %v3054, %v2163
      %v3208 = vmul.f32 %v3059, %v2168
      %v3209 = vmul.f32 %v3064, %v2171
      %v3210 = vmul.f32 %v3069, %v2176
      %v3211 = vmul.f32 %v3074, %v2179
      %v3212 = vmul.f32 %v3079, %v2184
      %v3213 = vmul.f32 %v3084, %v2187
      %v3214 = vsel %vm2318, %v1680, %v3086
      %v3215 = vsel %vm2319, %v1683, %v3087
      %v3216 = vsel %vm2320, %v1688, %v3088
      %v3217 = vsel %vm2321, %v1691, %v3089
      %v3218 = vsel %vm2322, %v1696, %v3090
      %v3219 = vsel %vm2323, %v1699, %v3091
      %v3220 = vsel %vm2324, %v1704, %v3092
      %v3221 = vsel %vm2325, %v1707, %v3093
      %v3222 = vsel %vm2326, %v1712, %v3094
      %v3223 = vsel %vm2327, %v1715, %v3095
      %v3224 = vsel %vm2328, %v1720, %v3096
      %v3225 = vsel %vm2329, %v1723, %v3097
      %v3226 = vsel %vm2330, %v1728, %v3098
      %v3227 = vsel %vm2331, %v1731, %v3099
      %v3228 = vsel %vm2332, %v1736, %v3100
      %v3229 = vsel %vm2333, %v1739, %v3101
      %v3230 = vsel %vm2334, %v1744, %v3102
      %v3231 = vsel %vm2335, %v1747, %v3103
      %v3232 = vsel %vm2336, %v1752, %v3104
      %v3233 = vsel %vm2337, %v1755, %v3105
      %v3234 = vsel %vm2338, %v1760, %v3106
      %v3235 = vsel %vm2339, %v1763, %v3107
      %v3236 = vsel %vm2340, %v1768, %v3108
      %v3237 = vsel %vm2341, %v1771, %v3109
      %v3238 = vsel %vm2342, %v1776, %v3110
      %v3239 = vsel %vm2343, %v1779, %v3111
      %v3240 = vsel %vm2344, %v1784, %v3112
      %v3241 = vsel %vm2345, %v1787, %v3113
      %v3242 = vsel %vm2346, %v1792, %v3114
      %v3243 = vsel %vm2347, %v1795, %v3115
      %v3244 = vsel %vm2348, %v1800, %v3116
      %v3245 = vsel %vm2349, %v1803, %v3117
      %v3246 = vsel %vm2350, %v1808, %v3118
      %v3247 = vsel %vm2351, %v1811, %v3119
      %v3248 = vsel %vm2352, %v1816, %v3120
      %v3249 = vsel %vm2353, %v1819, %v3121
      %v3250 = vsel %vm2354, %v1824, %v3122
      %v3251 = vsel %vm2355, %v1827, %v3123
      %v3252 = vsel %vm2356, %v1832, %v3124
      %v3253 = vsel %vm2357, %v1835, %v3125
      %v3254 = vsel %vm2358, %v1840, %v3126
      %v3255 = vsel %vm2359, %v1843, %v3127
      %v3256 = vsel %vm2360, %v1848, %v3128
      %v3257 = vsel %vm2361, %v1851, %v3129
      %v3258 = vsel %vm2362, %v1856, %v3130
      %v3259 = vsel %vm2363, %v1859, %v3131
      %v3260 = vsel %vm2364, %v1864, %v3132
      %v3261 = vsel %vm2365, %v1867, %v3133
      %v3262 = vsel %vm2366, %v1872, %v3134
      %v3263 = vsel %vm2367, %v1875, %v3135
      %v3264 = vsel %vm2368, %v1880, %v3136
      %v3265 = vsel %vm2369, %v1883, %v3137
      %v3266 = vsel %vm2370, %v1888, %v3138
      %v3267 = vsel %vm2371, %v1891, %v3139
      %v3268 = vsel %vm2372, %v1896, %v3140
      %v3269 = vsel %vm2373, %v1899, %v3141
      %v3270 = vsel %vm2374, %v1904, %v3142
      %v3271 = vsel %vm2375, %v1907, %v3143
      %v3272 = vsel %vm2376, %v1912, %v3144
      %v3273 = vsel %vm2377, %v1915, %v3145
      %v3274 = vsel %vm2378, %v1920, %v3146
      %v3275 = vsel %vm2379, %v1923, %v3147
      %v3276 = vsel %vm2380, %v1928, %v3148
      %v3277 = vsel %vm2381, %v1931, %v3149
      %v3278 = vsel %vm2382, %v1936, %v3150
      %v3279 = vsel %vm2383, %v1939, %v3151
      %v3280 = vsel %vm2384, %v1944, %v3152
      %v3281 = vsel %vm2385, %v1947, %v3153
      %v3282 = vsel %vm2386, %v1952, %v3154
      %v3283 = vsel %vm2387, %v1955, %v3155
      %v3284 = vsel %vm2388, %v1960, %v3156
      %v3285 = vsel %vm2389, %v1963, %v3157
      %v3286 = vsel %vm2390, %v1968, %v3158
      %v3287 = vsel %vm2391, %v1971, %v3159
      %v3288 = vsel %vm2392, %v1976, %v3160
      %v3289 = vsel %vm2393, %v1979, %v3161
      %v3290 = vsel %vm2394, %v1984, %v3162
      %v3291 = vsel %vm2395, %v1987, %v3163
      %v3292 = vsel %vm2396, %v1992, %v3164
      %v3293 = vsel %vm2397, %v1995, %v3165
      %v3294 = vsel %vm2398, %v2000, %v3166
      %v3295 = vsel %vm2399, %v2003, %v3167
      %v3296 = vsel %vm2400, %v2008, %v3168
      %v3297 = vsel %vm2401, %v2011, %v3169
      %v3298 = vsel %vm2402, %v2016, %v3170
      %v3299 = vsel %vm2403, %v2019, %v3171
      %v3300 = vsel %vm2404, %v2024, %v3172
      %v3301 = vsel %vm2405, %v2027, %v3173
      %v3302 = vsel %vm2406, %v2032, %v3174
      %v3303 = vsel %vm2407, %v2035, %v3175
      %v3304 = vsel %vm2408, %v2040, %v3176
      %v3305 = vsel %vm2409, %v2043, %v3177
      %v3306 = vsel %vm2410, %v2048, %v3178
      %v3307 = vsel %vm2411, %v2051, %v3179
      %v3308 = vsel %vm2412, %v2056, %v3180
      %v3309 = vsel %vm2413, %v2059, %v3181
      %v3310 = vsel %vm2414, %v2064, %v3182
      %v3311 = vsel %vm2415, %v2067, %v3183
      %v3312 = vsel %vm2416, %v2072, %v3184
      %v3313 = vsel %vm2417, %v2075, %v3185
      %v3314 = vsel %vm2418, %v2080, %v3186
      %v3315 = vsel %vm2419, %v2083, %v3187
      %v3316 = vsel %vm2420, %v2088, %v3188
      %v3317 = vsel %vm2421, %v2091, %v3189
      %v3318 = vsel %vm2422, %v2096, %v3190
      %v3319 = vsel %vm2423, %v2099, %v3191
      %v3320 = vsel %vm2424, %v2104, %v3192
      %v3321 = vsel %vm2425, %v2107, %v3193
      %v3322 = vsel %vm2426, %v2112, %v3194
      %v3323 = vsel %vm2427, %v2115, %v3195
      %v3324 = vsel %vm2428, %v2120, %v3196
      %v3325 = vsel %vm2429, %v2123, %v3197
      %v3326 = vsel %vm2430, %v2128, %v3198
      %v3327 = vsel %vm2431, %v2131, %v3199
      %v3328 = vsel %vm2432, %v2136, %v3200
      %v3329 = vsel %vm2433, %v2139, %v3201
      %v3330 = vsel %vm2434, %v2144, %v3202
      %v3331 = vsel %vm2435, %v2147, %v3203
      %v3332 = vsel %vm2436, %v2152, %v3204
      %v3333 = vsel %vm2437, %v2155, %v3205
      %v3334 = vsel %vm2438, %v2160, %v3206
      %v3335 = vsel %vm2439, %v2163, %v3207
      %v3336 = vsel %vm2440, %v2168, %v3208
      %v3337 = vsel %vm2441, %v2171, %v3209
      %v3338 = vsel %vm2442, %v2176, %v3210
      %v3339 = vsel %vm2443, %v2179, %v3211
      %v3340 = vsel %vm2444, %v2184, %v3212
      %v3341 = vsel %vm2445, %v2187, %v3213
      %vm3342 = vcmask 523264
      %3343 = vst.msk [vmem:[%s228] sm:$0xff] %vm3342, %v3214
      %3344 = vst.msk [vmem:[%s228 + $0x8] sm:$0xff] %vm3342, %v3215
      %3345 = vst.msk [vmem:[%s228 + $0x10] sm:$0xff] %vm3342, %v3216
      %3346 = vst.msk [vmem:[%s228 + $0x18] sm:$0xff] %vm3342, %v3217
      %3347 = vst.msk [vmem:[%s228 + $0x20] sm:$0xff] %vm3342, %v3218
      %3348 = vst.msk [vmem:[%s228 + $0x28] sm:$0xff] %vm3342, %v3219
      %3349 = vst.msk [vmem:[%s228 + $0x30] sm:$0xff] %vm3342, %v3220
      %3350 = vst.msk [vmem:[%s228 + $0x38] sm:$0xff] %vm3342, %v3221
      %3351 = vst.msk [vmem:[%s228 + $0x40] sm:$0xff] %vm3342, %v3222
      %3352 = vst.msk [vmem:[%s228 + $0x48] sm:$0xff] %vm3342, %v3223
      %3353 = vst.msk [vmem:[%s228 + $0x50] sm:$0xff] %vm3342, %v3224
      %3354 = vst.msk [vmem:[%s228 + $0x58] sm:$0xff] %vm3342, %v3225
      %3355 = vst.msk [vmem:[%s228 + $0x60] sm:$0xff] %vm3342, %v3226
      %3356 = vst.msk [vmem:[%s228 + $0x68] sm:$0xff] %vm3342, %v3227
      %3357 = vst.msk [vmem:[%s228 + $0x70] sm:$0xff] %vm3342, %v3228
      %3358 = vst.msk [vmem:[%s228 + $0x78] sm:$0xff] %vm3342, %v3229
      %3359 = vst.msk [vmem:[%s228 + $0x80] sm:$0xff] %vm3342, %v3230
      %3360 = vst.msk [vmem:[%s228 + $0x88] sm:$0xff] %vm3342, %v3231
      %3361 = vst.msk [vmem:[%s228 + $0x90] sm:$0xff] %vm3342, %v3232
      %3362 = vst.msk [vmem:[%s228 + $0x98] sm:$0xff] %vm3342, %v3233
      %3363 = vst.msk [vmem:[%s228 + $0xa0] sm:$0xff] %vm3342, %v3234
      %3364 = vst.msk [vmem:[%s228 + $0xa8] sm:$0xff] %vm3342, %v3235
      %3365 = vst.msk [vmem:[%s228 + $0xb0] sm:$0xff] %vm3342, %v3236
      %3366 = vst.msk [vmem:[%s228 + $0xb8] sm:$0xff] %vm3342, %v3237
      %3367 = vst.msk [vmem:[%s228 + $0xc0] sm:$0xff] %vm3342, %v3238
      %3368 = vst.msk [vmem:[%s228 + $0xc8] sm:$0xff] %vm3342, %v3239
      %3369 = vst.msk [vmem:[%s228 + $0xd0] sm:$0xff] %vm3342, %v3240
      %3370 = vst.msk [vmem:[%s228 + $0xd8] sm:$0xff] %vm3342, %v3241
      %3371 = vst.msk [vmem:[%s228 + $0xe0] sm:$0xff] %vm3342, %v3242
      %3372 = vst.msk [vmem:[%s228 + $0xe8] sm:$0xff] %vm3342, %v3243
      %3373 = vst.msk [vmem:[%s228 + $0xf0] sm:$0xff] %vm3342, %v3244
      %3374 = vst.msk [vmem:[%s228 + $0xf8] sm:$0xff] %vm3342, %v3245
      %3375 = vst.msk [vmem:[%s228 + $0x100] sm:$0xff] %vm3342, %v3246
      %3376 = vst.msk [vmem:[%s228 + $0x108] sm:$0xff] %vm3342, %v3247
      %3377 = vst.msk [vmem:[%s228 + $0x110] sm:$0xff] %vm3342, %v3248
      %3378 = vst.msk [vmem:[%s228 + $0x118] sm:$0xff] %vm3342, %v3249
      %3379 = vst.msk [vmem:[%s228 + $0x120] sm:$0xff] %vm3342, %v3250
      %3380 = vst.msk [vmem:[%s228 + $0x128] sm:$0xff] %vm3342, %v3251
      %3381 = vst.msk [vmem:[%s228 + $0x130] sm:$0xff] %vm3342, %v3252
      %3382 = vst.msk [vmem:[%s228 + $0x138] sm:$0xff] %vm3342, %v3253
      %3383 = vst.msk [vmem:[%s228 + $0x140] sm:$0xff] %vm3342, %v3254
      %3384 = vst.msk [vmem:[%s228 + $0x148] sm:$0xff] %vm3342, %v3255
      %3385 = vst.msk [vmem:[%s228 + $0x150] sm:$0xff] %vm3342, %v3256
      %3386 = vst.msk [vmem:[%s228 + $0x158] sm:$0xff] %vm3342, %v3257
      %3387 = vst.msk [vmem:[%s228 + $0x160] sm:$0xff] %vm3342, %v3258
      %3388 = vst.msk [vmem:[%s228 + $0x168] sm:$0xff] %vm3342, %v3259
      %3389 = vst.msk [vmem:[%s228 + $0x170] sm:$0xff] %vm3342, %v3260
      %3390 = vst.msk [vmem:[%s228 + $0x178] sm:$0xff] %vm3342, %v3261
      %3391 = vst.msk [vmem:[%s228 + $0x180] sm:$0xff] %vm3342, %v3262
      %3392 = vst.msk [vmem:[%s228 + $0x188] sm:$0xff] %vm3342, %v3263
      %3393 = vst.msk [vmem:[%s228 + $0x190] sm:$0xff] %vm3342, %v3264
      %3394 = vst.msk [vmem:[%s228 + $0x198] sm:$0xff] %vm3342, %v3265
      %3395 = vst.msk [vmem:[%s228 + $0x1a0] sm:$0xff] %vm3342, %v3266
      %3396 = vst.msk [vmem:[%s228 + $0x1a8] sm:$0xff] %vm3342, %v3267
      %3397 = vst.msk [vmem:[%s228 + $0x1b0] sm:$0xff] %vm3342, %v3268
      %3398 = vst.msk [vmem:[%s228 + $0x1b8] sm:$0xff] %vm3342, %v3269
      %3399 = vst.msk [vmem:[%s228 + $0x1c0] sm:$0xff] %vm3342, %v3270
      %3400 = vst.msk [vmem:[%s228 + $0x1c8] sm:$0xff] %vm3342, %v3271
      %3401 = vst.msk [vmem:[%s228 + $0x1d0] sm:$0xff] %vm3342, %v3272
      %3402 = vst.msk [vmem:[%s228 + $0x1d8] sm:$0xff] %vm3342, %v3273
      %3403 = vst.msk [vmem:[%s228 + $0x1e0] sm:$0xff] %vm3342, %v3274
      %3404 = vst.msk [vmem:[%s228 + $0x1e8] sm:$0xff] %vm3342, %v3275
      %3405 = vst.msk [vmem:[%s228 + $0x1f0] sm:$0xff] %vm3342, %v3276
      %3406 = vst.msk [vmem:[%s228 + $0x1f8] sm:$0xff] %vm3342, %v3277
      %3407 = vst.msk [vmem:[%s228 + $0x200] sm:$0xff] %vm3342, %v3278
      %3408 = vst.msk [vmem:[%s228 + $0x208] sm:$0xff] %vm3342, %v3279
      %3409 = vst.msk [vmem:[%s228 + $0x210] sm:$0xff] %vm3342, %v3280
      %3410 = vst.msk [vmem:[%s228 + $0x218] sm:$0xff] %vm3342, %v3281
      %3411 = vst.msk [vmem:[%s228 + $0x220] sm:$0xff] %vm3342, %v3282
      %3412 = vst.msk [vmem:[%s228 + $0x228] sm:$0xff] %vm3342, %v3283
      %3413 = vst.msk [vmem:[%s228 + $0x230] sm:$0xff] %vm3342, %v3284
      %3414 = vst.msk [vmem:[%s228 + $0x238] sm:$0xff] %vm3342, %v3285
      %3415 = vst.msk [vmem:[%s228 + $0x240] sm:$0xff] %vm3342, %v3286
      %3416 = vst.msk [vmem:[%s228 + $0x248] sm:$0xff] %vm3342, %v3287
      %3417 = vst.msk [vmem:[%s228 + $0x250] sm:$0xff] %vm3342, %v3288
      %3418 = vst.msk [vmem:[%s228 + $0x258] sm:$0xff] %vm3342, %v3289
      %3419 = vst.msk [vmem:[%s228 + $0x260] sm:$0xff] %vm3342, %v3290
      %3420 = vst.msk [vmem:[%s228 + $0x268] sm:$0xff] %vm3342, %v3291
      %3421 = vst.msk [vmem:[%s228 + $0x270] sm:$0xff] %vm3342, %v3292
      %3422 = vst.msk [vmem:[%s228 + $0x278] sm:$0xff] %vm3342, %v3293
      %3423 = vst.msk [vmem:[%s228 + $0x280] sm:$0xff] %vm3342, %v3294
      %3424 = vst.msk [vmem:[%s228 + $0x288] sm:$0xff] %vm3342, %v3295
      %3425 = vst.msk [vmem:[%s228 + $0x290] sm:$0xff] %vm3342, %v3296
      %3426 = vst.msk [vmem:[%s228 + $0x298] sm:$0xff] %vm3342, %v3297
      %3427 = vst.msk [vmem:[%s228 + $0x2a0] sm:$0xff] %vm3342, %v3298
      %3428 = vst.msk [vmem:[%s228 + $0x2a8] sm:$0xff] %vm3342, %v3299
      %3429 = vst.msk [vmem:[%s228 + $0x2b0] sm:$0xff] %vm3342, %v3300
      %3430 = vst.msk [vmem:[%s228 + $0x2b8] sm:$0xff] %vm3342, %v3301
      %3431 = vst.msk [vmem:[%s228 + $0x2c0] sm:$0xff] %vm3342, %v3302
      %3432 = vst.msk [vmem:[%s228 + $0x2c8] sm:$0xff] %vm3342, %v3303
      %3433 = vst.msk [vmem:[%s228 + $0x2d0] sm:$0xff] %vm3342, %v3304
      %3434 = vst.msk [vmem:[%s228 + $0x2d8] sm:$0xff] %vm3342, %v3305
      %3435 = vst.msk [vmem:[%s228 + $0x2e0] sm:$0xff] %vm3342, %v3306
      %3436 = vst.msk [vmem:[%s228 + $0x2e8] sm:$0xff] %vm3342, %v3307
      %3437 = vst.msk [vmem:[%s228 + $0x2f0] sm:$0xff] %vm3342, %v3308
      %3438 = vst.msk [vmem:[%s228 + $0x2f8] sm:$0xff] %vm3342, %v3309
      %3439 = vst.msk [vmem:[%s228 + $0x300] sm:$0xff] %vm3342, %v3310
      %3440 = vst.msk [vmem:[%s228 + $0x308] sm:$0xff] %vm3342, %v3311
      %3441 = vst.msk [vmem:[%s228 + $0x310] sm:$0xff] %vm3342, %v3312
      %3442 = vst.msk [vmem:[%s228 + $0x318] sm:$0xff] %vm3342, %v3313
      %3443 = vst.msk [vmem:[%s228 + $0x320] sm:$0xff] %vm3342, %v3314
      %3444 = vst.msk [vmem:[%s228 + $0x328] sm:$0xff] %vm3342, %v3315
      %3445 = vst.msk [vmem:[%s228 + $0x330] sm:$0xff] %vm3342, %v3316
      %3446 = vst.msk [vmem:[%s228 + $0x338] sm:$0xff] %vm3342, %v3317
      %3447 = vst.msk [vmem:[%s228 + $0x340] sm:$0xff] %vm3342, %v3318
      %3448 = vst.msk [vmem:[%s228 + $0x348] sm:$0xff] %vm3342, %v3319
      %3449 = vst.msk [vmem:[%s228 + $0x350] sm:$0xff] %vm3342, %v3320
      %3450 = vst.msk [vmem:[%s228 + $0x358] sm:$0xff] %vm3342, %v3321
      %3451 = vst.msk [vmem:[%s228 + $0x360] sm:$0xff] %vm3342, %v3322
      %3452 = vst.msk [vmem:[%s228 + $0x368] sm:$0xff] %vm3342, %v3323
      %3453 = vst.msk [vmem:[%s228 + $0x370] sm:$0xff] %vm3342, %v3324
      %3454 = vst.msk [vmem:[%s228 + $0x378] sm:$0xff] %vm3342, %v3325
      %3455 = vst.msk [vmem:[%s228 + $0x380] sm:$0xff] %vm3342, %v3326
      %3456 = vst.msk [vmem:[%s228 + $0x388] sm:$0xff] %vm3342, %v3327
      %3457 = vst.msk [vmem:[%s228 + $0x390] sm:$0xff] %vm3342, %v3328
      %3458 = vst.msk [vmem:[%s228 + $0x398] sm:$0xff] %vm3342, %v3329
      %3459 = vst.msk [vmem:[%s228 + $0x3a0] sm:$0xff] %vm3342, %v3330
      %3460 = vst.msk [vmem:[%s228 + $0x3a8] sm:$0xff] %vm3342, %v3331
      %3461 = vst.msk [vmem:[%s228 + $0x3b0] sm:$0xff] %vm3342, %v3332
      %3462 = vst.msk [vmem:[%s228 + $0x3b8] sm:$0xff] %vm3342, %v3333
      %3463 = vst.msk [vmem:[%s228 + $0x3c0] sm:$0xff] %vm3342, %v3334
      %3464 = vst.msk [vmem:[%s228 + $0x3c8] sm:$0xff] %vm3342, %v3335
      %3465 = vst.msk [vmem:[%s228 + $0x3d0] sm:$0xff] %vm3342, %v3336
      %3466 = vst.msk [vmem:[%s228 + $0x3d8] sm:$0xff] %vm3342, %v3337
      %3467 = vst.msk [vmem:[%s228 + $0x3e0] sm:$0xff] %vm3342, %v3338
      %3468 = vst.msk [vmem:[%s228 + $0x3e8] sm:$0xff] %vm3342, %v3339
      %3469 = vst.msk [vmem:[%s228 + $0x3f0] sm:$0xff] %vm3342, %v3340
      %3470 = vst.msk [vmem:[%s228 + $0x3f8] sm:$0xff] %vm3342, %v3341
      %p3471 = scmp.lt.s32.totalorder %s19, 1
      %s3472 = scalar_select %p3471, %s19, 1
      %p3473 = scmp.lt.s32.totalorder %s20, 0
      %s3474 = scalar_select %p3473, %s20, 0
      %s3475 = smul.addr %s3472, 128
      %s3476 = sadd.s32 %s3474, %s3475
      %s3477 = smul.addr %s3476, 8
      %s3478 = scalar_lea.vmem %s4, %s3477
      // Predicated region
      $region37: #{tpu_custom_call.1} parent=35 // pred_check
        %p3479 = pneg %p138
      $region38: #{tpu_custom_call.1} parent=35 // pred_check_branch
        %3481 = sbr.rel (%p3479) target = $region40
      $region39: #{tpu_custom_call.1} parent=35 // pred_region
        _
      $region40: #{tpu_custom_call.1} parent=35 // pred_fallthru
        _
    $region36: #{tpu_custom_call.1} parent=5 // pred_fallthru
      _
    %p3482 = scmp.le.s32.totalorder 2, %s10
    // Predicated region
    $region41: #{tpu_custom_call.1} parent=5 // pred_check
      %p3483 = pneg %p3482
    $region42: #{tpu_custom_call.1} parent=5 // pred_check_branch
      %3485 = sbr.rel (%p3483) target = $region44
    $region43: #{tpu_custom_call.1} parent=5 // pred_region
      %s3486 = ssub.s32 %s10, 2
      // Predicated region
      $region45: #{tpu_custom_call.1} parent=43 // pred_check
        %p3487 = pneg %p144
      $region46: #{tpu_custom_call.1} parent=43 // pred_check_branch
        %3489 = sbr.rel (%p3487) target = $region48
      $region47: #{tpu_custom_call.1} parent=43 // pred_region
        %p3490 = scmp.lt.s32.totalorder %s21, 1
        %s3491 = scalar_select %p3490, %s21, 1
        %p3492 = scmp.lt.s32.totalorder %s22, 0
        %s3493 = scalar_select %p3492, %s22, 0
        %s3494 = smul.addr %s3491, 128
        %s3495 = sadd.s32 %s3493, %s3494
        %s3496 = smul.addr %s3495, 8
        %s3497 = scalar_lea.vmem %s4, %s3496
      $region48: #{tpu_custom_call.1} parent=43 // pred_fallthru
        _
    $region44: #{tpu_custom_call.1} parent=5 // pred_fallthru
      _
  $region6: #{tpu_custom_call.1} parent=0 // loop_footer
    %s14 = sadd.s32 1, %s10
  $region7: #{tpu_custom_call.1} parent=0 // loop_footer_branch
    %9 = sbr.rel target = $region3
  $region8: #{tpu_custom_call.1} parent=0 // loop_exit
    _

</llo_original>
